<compile_context>
chip_gen: v5e
topology: v5e:2x2
jax: 0.10.0
libtpu: 0.0.40
codegen_flags: <defaults>
</compile_context>

<pallas_src>
import functools

import jax
import jax.numpy as jnp
from jax import lax
from jax.experimental import pallas as pl
from jax.experimental.pallas import tpu as pltpu


def _attributes_conv_kernel(dn_ref, a_ref, x_ref, w_ref, b_ref, gamma_ref,
                            beta_ref, out_ref, m_sc, s_sc, *,
                            feats_resident, weights_resident):
    attr = pl.program_id(1)

    @pl.when(attr == 0)
    def _():
        m_sc[...] = jnp.full_like(m_sc, -jnp.inf)
        s_sc[...] = jnp.zeros_like(s_sc)

    # --- DGL GraphConv(norm='both') for this attribute, this dst tile ---
    a = a_ref[0].astype(jnp.bfloat16)                 # (TM, Np) int8 -> bf16 (0/1 exact)
    x = x_ref[attr] if feats_resident else x_ref[0]   # (Np, D) bf16, pre src-normalized
    msg = jnp.dot(a, x, preferred_element_type=jnp.float32)   # bf16 MXU, f32 accum
    msg = msg * dn_ref[0]                             # dst (in-degree^-1/2) norm, (TM, 1)

    w = w_ref[attr] if weights_resident else w_ref[0]          # (D, D) bf16
    h = jnp.dot(msg.astype(jnp.bfloat16), w,
                preferred_element_type=jnp.float32) + b_ref[attr]
    h = jnp.maximum(h, 0.0)                           # ReLU

    # --- online logsumexp over the attribute axis ('lse' aggregation) ---
    m_new = jnp.maximum(m_sc[...], h)
    s_sc[...] = s_sc[...] * jnp.exp(m_sc[...] - m_new) + jnp.exp(h - m_new)
    m_sc[...] = m_new

    # --- finalize: LSE + LayerNorm(eps=1e-6, elementwise affine) ---
    @pl.when(attr == pl.num_programs(1) - 1)
    def _():
        agg = m_sc[...] + jnp.log(s_sc[...])
        mean = jnp.mean(agg, axis=-1, keepdims=True)
        var = jnp.mean((agg - mean) ** 2, axis=-1, keepdims=True)
        normed = (agg - mean) * lax.rsqrt(var + 1e-6)
        out_ref[...] = (normed * gamma_ref[...] + beta_ref[...]).astype(out_ref.dtype)


def prepare_attributes_graph(adj):
    """Once-per-graph preprocessing (hoisted out of the per-call hot path).

    adj: (A, N, N) f32 0/1 adjacency, dst x src.
    Returns (adj_int8, src_norm (A,N,1), dst_norm (A,N,1)) -- the compact
    adjacency and the clamped out-/in-degree rsqrt norms of GraphConv('both').
    """
    adj_i8 = adj.astype(jnp.int8)                               # 0/1 -> exact
    out_deg = jnp.clip(jnp.sum(adj, axis=1), 1.0, None)         # src out-degree
    in_deg = jnp.clip(jnp.sum(adj, axis=2), 1.0, None)          # dst in-degree
    src_norm = (out_deg ** -0.5)[..., None].astype(jnp.float32)
    dst_norm = (in_deg ** -0.5)[..., None].astype(jnp.float32)
    return adj_i8, src_norm, dst_norm


def attributes_conv(adj_i8, src_norm, dst_norm, feats, weights, biases,
                    gamma, beta, *, block_m=None):
    """adj_i8:(A,N,N) int8 dst x src; feats:(A,N,D); weights:(A,D,D); biases:(A,D)."""
    A_, N, N2 = adj_i8.shape
    assert N == N2
    D = feats.shape[-1]
    # TODO(synk): general D would need LN masking over padded lanes; require
    # lane-dense hidden size instead.
    assert D % 128 == 0, "hidden size must be a multiple of 128 (lane-dense)"

    try:
        vmem_cap = pltpu.get_tpu_info().vmem_capacity_bytes
    except Exception:  # pragma: no cover - CPU interpret / older jax
        vmem_cap = 128 << 20

    # dst tile: big on 128-MiB chips (v5e/v6e), 256 on v7x (64 MiB); shrink
    # until at least 2 dst tiles exist so the "parallel" axis feeds megacore.
    if block_m is None:
        block_m = 512 if vmem_cap >= (96 << 20) else 256
    assert block_m % 128 == 0 and block_m >= 128
    tm = block_m
    n_pad_to = pl.cdiv(N, tm) * tm
    while n_pad_to // tm < 2 and tm > 128:
        tm //= 2
        n_pad_to = pl.cdiv(N, tm) * tm
    num_m = n_pad_to // tm
    pad_n = n_pad_to - N

    if pad_n:
        # Padded rows/cols are zeros; clamped degree norms keep them finite.
        adj_i8 = jnp.pad(adj_i8, ((0, 0), (0, pad_n), (0, pad_n)))
        src_norm = jnp.pad(src_norm, ((0, 0), (0, pad_n), (0, 0)),
                           constant_values=1.0)
        dst_norm = jnp.pad(dst_norm, ((0, 0), (0, pad_n), (0, 0)),
                           constant_values=1.0)
        feats = jnp.pad(feats, ((0, 0), (0, pad_n), (0, 0)))
    Np = n_pad_to

    # Per-call feature prep: src-normalize in f32 then cast to bf16 once.
    x_hat = (feats.astype(jnp.float32) * src_norm).astype(jnp.bfloat16)  # (A,Np,D)
    w_bf16 = weights.astype(jnp.bfloat16)                                # (A,D,D)
    bias3 = biases.astype(jnp.float32)[:, None, :]                       # (A,1,D)
    gamma2 = gamma.astype(jnp.float32)[None, :]                          # (1,D)
    beta2 = beta.astype(jnp.float32)[None, :]                            # (1,D)

    # Residency decisions (constant index_map => loaded once, no re-DMA).
    feats_bytes = A_ * Np * D * 2
    w_bytes = A_ * D * D * 2
    feats_resident = 2 * feats_bytes <= min(24 << 20, vmem_cap // 4)
    weights_resident = 2 * w_bytes <= (8 << 20)

    if feats_resident:
        x_spec = pl.BlockSpec((A_, Np, D), lambda i, a: (0, 0, 0))
    else:
        x_spec = pl.BlockSpec((1, Np, D), lambda i, a: (a, 0, 0))
    if weights_resident:
        w_spec = pl.BlockSpec((A_, D, D), lambda i, a: (0, 0, 0))
    else:
        w_spec = pl.BlockSpec((1, D, D), lambda i, a: (a, 0, 0))

    in_specs = [
        pl.BlockSpec((1, tm, 1), lambda i, a: (a, i, 0)),      # dst-degree norm tile
        pl.BlockSpec((1, tm, Np), lambda i, a: (a, i, 0)),     # int8 adjacency tile
        x_spec,                                                # normalized feats (bf16)
        w_spec,                                                # weights (bf16)
        pl.BlockSpec((A_, 1, D), lambda i, a: (0, 0, 0)),      # biases (resident)
        pl.BlockSpec((1, D), lambda i, a: (0, 0)),             # layernorm gamma
        pl.BlockSpec((1, D), lambda i, a: (0, 0)),             # layernorm beta
    ]

    # Conservative VMEM budget (all blocks counted double-buffered) clamped to
    # 85% of the chip's physical VMEM (64 MiB on v7x, 128 MiB on v5e/v6e).
    vmem_bytes = (
        2 * tm * Np * 1                                        # adjacency (int8)
        + 2 * tm * 4                                           # dst norm
        + 2 * (feats_bytes if feats_resident else Np * D * 2)  # features (bf16)
        + 2 * (w_bytes if weights_resident else D * D * 2)     # weights (bf16)
        + 2 * A_ * D * 4                                       # biases
        + 4 * D * 4                                            # LN gamma/beta
        + 2 * tm * D * 4                                       # output tile
        + 2 * tm * D * 4                                       # LSE scratch (m, s)
    )
    vmem_limit = int(min(0.85 * vmem_cap,
                         max(32 << 20, vmem_bytes * 1.4 + (4 << 20))))

    kernel = functools.partial(_attributes_conv_kernel,
                               feats_resident=feats_resident,
                               weights_resident=weights_resident)
    grid_spec = pltpu.PrefetchScalarGridSpec(
        num_scalar_prefetch=0,
        grid=(num_m, A_),                  # dst tiles (parallel), attributes last
        in_specs=in_specs,
        out_specs=pl.BlockSpec((tm, D), lambda i, a: (i, 0)),
        scratch_shapes=[pltpu.VMEM((tm, D), jnp.float32),      # running max
                        pltpu.VMEM((tm, D), jnp.float32)],     # running sum-exp
    )
    out = pl.pallas_call(
        kernel,
        out_shape=jax.ShapeDtypeStruct((Np, D), jnp.float32),
        grid_spec=grid_spec,
        compiler_params=pltpu.CompilerParams(
            dimension_semantics=("parallel", "arbitrary"),
            vmem_limit_bytes=vmem_limit),
    )(dst_norm, adj_i8, x_hat, w_bf16, bias3, gamma2, beta2)
    return out[:N] if pad_n else out


def attributes_conv_reference(adj, feats, weights, biases, gamma, beta):
    """Pure-JAX f32 reference of the same forward pass."""
    out_deg = jnp.clip(jnp.sum(adj, axis=1), 1.0, None)
    in_deg = jnp.clip(jnp.sum(adj, axis=2), 1.0, None)
    hs = []
    for a in range(adj.shape[0]):
        x = feats[a] * (out_deg[a] ** -0.5)[:, None]
        m = (adj[a] @ x) * (in_deg[a] ** -0.5)[:, None]
        hs.append(jnp.maximum(m @ weights[a] + biases[a], 0.0))
    agg = jax.nn.logsumexp(jnp.stack(hs, axis=0), axis=0)
    mean = agg.mean(-1, keepdims=True)
    var = ((agg - mean) ** 2).mean(-1, keepdims=True)
    return (agg - mean) / jnp.sqrt(var + 1e-6) * gamma + beta


if __name__ == "__main__":
    # Small synthetic setup: 3 attributes (edge types), 256 nodes, hidden 128
    # (lane-dense).  The tile heuristic lands at tm=128 -> two dst tiles, so the
    # tiled/parallel path is exercised.
    NUM_ATTR, N, D = 3, 256, 128
    key = jax.random.PRNGKey(0)
    k_adj, k_x, k_w, k_b, k_g = jax.random.split(key, 5)

    # Random adjacency per attribute; add self-loops so no zero in-degree
    # (module uses allow_zero_in_degree=False).
    adj = (jax.random.uniform(k_adj, (NUM_ATTR, N, N)) < 0.25).astype(jnp.float32)
    adj = jnp.clip(adj + jnp.eye(N, dtype=jnp.float32)[None], 0.0, 1.0)

    feats = jax.random.normal(k_x, (NUM_ATTR, N, D), dtype=jnp.float32)
    weights = jax.random.normal(k_w, (NUM_ATTR, D, D), dtype=jnp.float32) * 0.1
    biases = jax.random.normal(k_b, (NUM_ATTR, D), dtype=jnp.float32) * 0.1
    gamma = 1.0 + 0.05 * jax.random.normal(k_g, (D,), dtype=jnp.float32)
    beta = jnp.zeros((D,), dtype=jnp.float32)

    # Once-per-graph prep (compact int8 adjacency + degree norms), hoisted out
    # of the per-call hot path.
    adj_i8, src_norm, dst_norm = prepare_attributes_graph(adj)

    out = attributes_conv(adj_i8, src_norm, dst_norm, feats, weights, biases,
                          gamma, beta)
    out = jax.block_until_ready(out)

    ref = attributes_conv_reference(adj, feats, weights, biases, gamma, beta)
    assert out.shape == (N, D)
    # bf16 adjacency/feature/weight path (f32 accumulation) vs f32 reference
    # -> relaxed tolerance, amplified slightly by the LayerNorm division.
    assert jnp.allclose(out, ref, atol=1e-1, rtol=1e-1), "mismatch vs reference"
    print("KERNEL_OK")
</pallas_src>

<mosaic_0001>
module attributes {stable_mosaic.version = 11 : i64} {
  func.func @_attributes_conv_kernel(%arg0: i32, %arg1: i32, %arg2: memref<1x128x1xf32, #tpu.memory_space<vmem>>, %arg3: memref<1x128x256xi8, #tpu.memory_space<vmem>>, %arg4: memref<3x256x128xbf16, #tpu.memory_space<vmem>>, %arg5: memref<3x128x128xbf16, #tpu.memory_space<vmem>>, %arg6: memref<3x1x128xf32, #tpu.memory_space<vmem>>, %arg7: memref<1x128xf32, #tpu.memory_space<vmem>>, %arg8: memref<1x128xf32, #tpu.memory_space<vmem>>, %arg9: memref<128x128xf32, #tpu.memory_space<vmem>>, %arg10: memref<128x128xf32, #tpu.memory_space<vmem>>, %arg11: memref<128x128xf32, #tpu.memory_space<vmem>>) attributes {dimension_semantics = [#tpu.dimension_semantics<parallel>, #tpu.dimension_semantics<arbitrary>], iteration_bounds = array<i64: 2, 3>, scalar_prefetch = 0 : i64, scratch_operands = 2 : i64, tpu.core_type = #tpu.core_type<tc>, window_params = [{transform_indices = @transform_0, window_bounds = array<i64: 1, 128, 1>}, {transform_indices = @transform_1, window_bounds = array<i64: 1, 128, 256>}, {pipeline_mode = #tpu.pipeline_mode<synchronous>, transform_indices = @transform_2, window_bounds = array<i64: 3, 256, 128>}, {pipeline_mode = #tpu.pipeline_mode<synchronous>, transform_indices = @transform_3, window_bounds = array<i64: 3, 128, 128>}, {pipeline_mode = #tpu.pipeline_mode<synchronous>, transform_indices = @transform_4, window_bounds = array<i64: 3, 1, 128>}, {pipeline_mode = #tpu.pipeline_mode<synchronous>, transform_indices = @transform_5, window_bounds = array<i64: 1, 128>}, {pipeline_mode = #tpu.pipeline_mode<synchronous>, transform_indices = @transform_6, window_bounds = array<i64: 1, 128>}, {transform_indices = @transform_7, window_bounds = array<i64: 128, 128>}]} {
    %c0_i32 = arith.constant 0 : i32
    %0 = arith.cmpi eq, %arg1, %c0_i32 : i32
    %1 = arith.extui %0 : i1 to i32
    %c0_i32_0 = arith.constant 0 : i32
    %2 = arith.cmpi ne, %1, %c0_i32_0 : i32
    scf.if %2 {
      %cst_25 = arith.constant 0xFF800000 : f32
      %41 = vector.broadcast %cst_25 : f32 to vector<128x128xf32>
      %c0_26 = arith.constant 0 : index
      %c0_27 = arith.constant 0 : index
      %42 = vector.load %arg10[%c0_26, %c0_27] : memref<128x128xf32, #tpu.memory_space<vmem>>, vector<128x128xf32>
      tpu.vector_store %arg10[%c0_26, %c0_27], %41 {strides = array<i32>} : memref<128x128xf32, #tpu.memory_space<vmem>>, vector<128x128xf32>,
      %cst_28 = arith.constant 0.000000e+00 : f32
      %43 = vector.broadcast %cst_28 : f32 to vector<128x128xf32>
      %c0_29 = arith.constant 0 : index
      %c0_30 = arith.constant 0 : index
      %44 = vector.load %arg11[%c0_29, %c0_30] : memref<128x128xf32, #tpu.memory_space<vmem>>, vector<128x128xf32>
      tpu.vector_store %arg11[%c0_29, %c0_30], %43 {strides = array<i32>} : memref<128x128xf32, #tpu.memory_space<vmem>>, vector<128x128xf32>,
    } else {
    }
    %c0 = arith.constant 0 : index
    %c0_1 = arith.constant 0 : index
    %c0_2 = arith.constant 0 : index
    %3 = vector.load %arg3[%c0, %c0_1, %c0_2] : memref<1x128x256xi8, #tpu.memory_space<vmem>>, vector<1x128x256xi8>
    %4 = vector.shape_cast %3 : vector<1x128x256xi8> to vector<128x256xi8>
    %5 = arith.sitofp %4 : vector<128x256xi8> to vector<128x256xbf16>
    %6 = arith.index_cast %arg1 : i32 to index
    %c0_3 = arith.constant 0 : index
    %c0_4 = arith.constant 0 : index
    %7 = vector.load %arg4[%6, %c0_3, %c0_4] : memref<3x256x128xbf16, #tpu.memory_space<vmem>>, vector<1x256x128xbf16>
    %8 = vector.shape_cast %7 : vector<1x256x128xbf16> to vector<256x128xbf16>
    %cst = arith.constant dense<0.000000e+00> : vector<128x128xf32>
    %9 = tpu.matmul %5, %8, %cst {dimension_numbers = #tpu.dot_dimension_numbers<[1], [0], [0], [1], [0, 0, 1, 1], [], []>} : vector<128x256xbf16>, vector<256x128xbf16>, vector<128x128xf32> -> vector<128x128xf32>
    %c0_5 = arith.constant 0 : index
    %c0_6 = arith.constant 0 : index
    %c0_7 = arith.constant 0 : index
    %10 = vector.load %arg2[%c0_5, %c0_6, %c0_7] : memref<1x128x1xf32, #tpu.memory_space<vmem>>, vector<1x128x1xf32>
    %11 = vector.shape_cast %10 : vector<1x128x1xf32> to vector<128x1xf32>
    %12 = vector.broadcast %11 : vector<128x1xf32> to vector<128x128xf32>
    %13 = arith.mulf %9, %12 : vector<128x128xf32>
    %14 = arith.index_cast %arg1 : i32 to index
    %c0_8 = arith.constant 0 : index
    %c0_9 = arith.constant 0 : index
    %15 = vector.load %arg5[%14, %c0_8, %c0_9] : memref<3x128x128xbf16, #tpu.memory_space<vmem>>, vector<1x128x128xbf16>
    %16 = vector.shape_cast %15 : vector<1x128x128xbf16> to vector<128x128xbf16>
    %17 = arith.truncf %13 : vector<128x128xf32> to vector<128x128xbf16>
    %cst_10 = arith.constant dense<0.000000e+00> : vector<128x128xf32>
    %18 = tpu.matmul %17, %16, %cst_10 {dimension_numbers = #tpu.dot_dimension_numbers<[1], [0], [0], [1], [0, 0, 1, 1], [], []>} : vector<128x128xbf16>, vector<128x128xbf16>, vector<128x128xf32> -> vector<128x128xf32>
    %19 = arith.index_cast %arg1 : i32 to index
    %c0_11 = arith.constant 0 : index
    %c0_12 = arith.constant 0 : index
    %20 = vector.load %arg6[%19, %c0_11, %c0_12] : memref<3x1x128xf32, #tpu.memory_space<vmem>>, vector<1x1x128xf32>
    %21 = vector.shape_cast %20 : vector<1x1x128xf32> to vector<1x128xf32>
    %22 = vector.broadcast %21 : vector<1x128xf32> to vector<128x128xf32>
    %23 = arith.addf %18, %22 : vector<128x128xf32>
    %cst_13 = arith.constant 0.000000e+00 : f32
    %24 = vector.broadcast %cst_13 : f32 to vector<128x128xf32>
    %25 = arith.maximumf %23, %24 : vector<128x128xf32>
    %c0_14 = arith.constant 0 : index
    %c0_15 = arith.constant 0 : index
    %26 = vector.load %arg10[%c0_14, %c0_15] : memref<128x128xf32, #tpu.memory_space<vmem>>, vector<128x128xf32>
    %27 = arith.maximumf %26, %25 : vector<128x128xf32>
    %c0_16 = arith.constant 0 : index
    %c0_17 = arith.constant 0 : index
    %28 = vector.load %arg11[%c0_16, %c0_17] : memref<128x128xf32, #tpu.memory_space<vmem>>, vector<128x128xf32>
    %c0_18 = arith.constant 0 : index
    %c0_19 = arith.constant 0 : index
    %29 = vector.load %arg10[%c0_18, %c0_19] : memref<128x128xf32, #tpu.memory_space<vmem>>, vector<128x128xf32>
    %30 = arith.subf %29, %27 : vector<128x128xf32>
    %31 = math.exp %30 : vector<128x128xf32>
    %32 = arith.mulf %28, %31 : vector<128x128xf32>
    %33 = arith.subf %25, %27 : vector<128x128xf32>
    %34 = math.exp %33 : vector<128x128xf32>
    %35 = arith.addf %32, %34 : vector<128x128xf32>
    %c0_20 = arith.constant 0 : index
    %c0_21 = arith.constant 0 : index
    %36 = vector.load %arg11[%c0_20, %c0_21] : memref<128x128xf32, #tpu.memory_space<vmem>>, vector<128x128xf32>
    tpu.vector_store %arg11[%c0_20, %c0_21], %35 {strides = array<i32>} : memref<128x128xf32, #tpu.memory_space<vmem>>, vector<128x128xf32>,
    %c0_22 = arith.constant 0 : index
    %c0_23 = arith.constant 0 : index
    %37 = vector.load %arg10[%c0_22, %c0_23] : memref<128x128xf32, #tpu.memory_space<vmem>>, vector<128x128xf32>
    tpu.vector_store %arg10[%c0_22, %c0_23], %27 {strides = array<i32>} : memref<128x128xf32, #tpu.memory_space<vmem>>, vector<128x128xf32>,
    %c2_i32 = arith.constant 2 : i32
    %38 = arith.cmpi eq, %arg1, %c2_i32 : i32
    %39 = arith.extui %38 : i1 to i32
    %c0_i32_24 = arith.constant 0 : i32
    %40 = arith.cmpi ne, %39, %c0_i32_24 : i32
    scf.if %40 {
      %c0_25 = arith.constant 0 : index
      %c0_26 = arith.constant 0 : index
      %41 = vector.load %arg10[%c0_25, %c0_26] : memref<128x128xf32, #tpu.memory_space<vmem>>, vector<128x128xf32>
      %c0_27 = arith.constant 0 : index
      %c0_28 = arith.constant 0 : index
      %42 = vector.load %arg11[%c0_27, %c0_28] : memref<128x128xf32, #tpu.memory_space<vmem>>, vector<128x128xf32>
      %43 = math.log %42 : vector<128x128xf32>
      %44 = arith.addf %41, %43 : vector<128x128xf32>
      %cst_29 = arith.constant dense<0.000000e+00> : vector<128xf32>
      %45 = vector.multi_reduction <add>, %44, %cst_29 [1] : vector<128x128xf32> to vector<128xf32>
      %46 = vector.shape_cast %45 : vector<128xf32> to vector<128x1xf32>
      %cst_30 = arith.constant 1.280000e+02 : f32
      %47 = vector.broadcast %cst_30 : f32 to vector<128x1xf32>
      %48 = arith.divf %46, %47 : vector<128x1xf32>
      %49 = vector.broadcast %48 : vector<128x1xf32> to vector<128x128xf32>
      %50 = arith.subf %44, %49 : vector<128x128xf32>
      %51 = arith.mulf %50, %50 : vector<128x128xf32>
      %cst_31 = arith.constant dense<0.000000e+00> : vector<128xf32>
      %52 = vector.multi_reduction <add>, %51, %cst_31 [1] : vector<128x128xf32> to vector<128xf32>
      %53 = vector.shape_cast %52 : vector<128xf32> to vector<128x1xf32>
      %cst_32 = arith.constant 1.280000e+02 : f32
      %54 = vector.broadcast %cst_32 : f32 to vector<128x1xf32>
      %55 = arith.divf %53, %54 : vector<128x1xf32>
      %56 = vector.broadcast %48 : vector<128x1xf32> to vector<128x128xf32>
      %57 = arith.subf %44, %56 : vector<128x128xf32>
      %cst_33 = arith.constant 9.99999997E-7 : f32
      %58 = vector.broadcast %cst_33 : f32 to vector<128x1xf32>
      %59 = arith.addf %55, %58 : vector<128x1xf32>
      %60 = math.rsqrt %59 : vector<128x1xf32>
      %61 = vector.broadcast %60 : vector<128x1xf32> to vector<128x128xf32>
      %62 = arith.mulf %57, %61 : vector<128x128xf32>
      %c0_34 = arith.constant 0 : index
      %c0_35 = arith.constant 0 : index
      %63 = vector.load %arg7[%c0_34, %c0_35] : memref<1x128xf32, #tpu.memory_space<vmem>>, vector<1x128xf32>
      %64 = vector.broadcast %63 : vector<1x128xf32> to vector<128x128xf32>
      %65 = arith.mulf %62, %64 : vector<128x128xf32>
      %c0_36 = arith.constant 0 : index
      %c0_37 = arith.constant 0 : index
      %66 = vector.load %arg8[%c0_36, %c0_37] : memref<1x128xf32, #tpu.memory_space<vmem>>, vector<1x128xf32>
      %67 = vector.broadcast %66 : vector<1x128xf32> to vector<128x128xf32>
      %68 = arith.addf %65, %67 : vector<128x128xf32>
      %c0_38 = arith.constant 0 : index
      %c0_39 = arith.constant 0 : index
      %69 = vector.load %arg9[%c0_38, %c0_39] : memref<128x128xf32, #tpu.memory_space<vmem>>, vector<128x128xf32>
      tpu.vector_store %arg9[%c0_38, %c0_39], %68 {strides = array<i32>} : memref<128x128xf32, #tpu.memory_space<vmem>>, vector<128x128xf32>,
    } else {
    }
    return
  }
  func.func @transform_0(%arg0: i32, %arg1: i32) -> (i32, i32, i32) {
    %c0_i32 = arith.constant 0 : i32
    %c0_i32_0 = arith.constant 0 : i32
    return %arg1, %arg0, %c0_i32 : i32, i32, i32
  }
  func.func @transform_1(%arg0: i32, %arg1: i32) -> (i32, i32, i32) {
    %c0_i32 = arith.constant 0 : i32
    %c0_i32_0 = arith.constant 0 : i32
    return %arg1, %arg0, %c0_i32 : i32, i32, i32
  }
  func.func @transform_2(%arg0: i32, %arg1: i32) -> (i32, i32, i32) {
    %c0_i32 = arith.constant 0 : i32
    %c0_i32_0 = arith.constant 0 : i32
    %c0_i32_1 = arith.constant 0 : i32
    %c0_i32_2 = arith.constant 0 : i32
    return %c0_i32, %c0_i32_0, %c0_i32_1 : i32, i32, i32
  }
  func.func @transform_3(%arg0: i32, %arg1: i32) -> (i32, i32, i32) {
    %c0_i32 = arith.constant 0 : i32
    %c0_i32_0 = arith.constant 0 : i32
    %c0_i32_1 = arith.constant 0 : i32
    %c0_i32_2 = arith.constant 0 : i32
    return %c0_i32, %c0_i32_0, %c0_i32_1 : i32, i32, i32
  }
  func.func @transform_4(%arg0: i32, %arg1: i32) -> (i32, i32, i32) {
    %c0_i32 = arith.constant 0 : i32
    %c0_i32_0 = arith.constant 0 : i32
    %c0_i32_1 = arith.constant 0 : i32
    %c0_i32_2 = arith.constant 0 : i32
    return %c0_i32, %c0_i32_0, %c0_i32_1 : i32, i32, i32
  }
  func.func @transform_5(%arg0: i32, %arg1: i32) -> (i32, i32) {
    %c0_i32 = arith.constant 0 : i32
    %c0_i32_0 = arith.constant 0 : i32
    %c0_i32_1 = arith.constant 0 : i32
    return %c0_i32, %c0_i32_0 : i32, i32
  }
  func.func @transform_6(%arg0: i32, %arg1: i32) -> (i32, i32) {
    %c0_i32 = arith.constant 0 : i32
    %c0_i32_0 = arith.constant 0 : i32
    %c0_i32_1 = arith.constant 0 : i32
    return %c0_i32, %c0_i32_0 : i32, i32
  }
  func.func @transform_7(%arg0: i32, %arg1: i32) -> (i32, i32) {
    %c0_i32 = arith.constant 0 : i32
    %c0_i32_0 = arith.constant 0 : i32
    return %arg0, %c0_i32 : i32, i32
  }
}

</mosaic_0001>

<llo_original>
// kernel: tpu_custom_call.1
$region0: #{tpu_custom_call.1}
  #allocation0 [shape = 'u32[]', space=smem, size = 0x4, offset = 0x4, fixed_abs, tag = 'smem constant byte address 0x4 - core index']
  #allocation1 [shape = 'u32[72,128]{1,0:T(1,128)}', space=vmem, size = 0x9000, scoped, tag = 'internal scratch']
  #allocation2 [shape = 'f32[128,128]{1,0:T(8,128)}', space=vmem, size = 0x10000, scoped, tag = 'scratch operand']
  #allocation3 [shape = 'f32[128,128]{1,0:T(8,128)}', space=vmem, size = 0x10000, scoped, tag = 'scratch operand']
  %s0 = inlined_call_operand.vmem [shape: f32[3,256,1], index: 0, kind: input, shape index: {}]
  %s1 = inlined_call_operand.vmem [shape: s8[3,256,256], index: 1, kind: input, shape index: {}]
  %s2 = inlined_call_operand.vmem [shape: bf16[3,256,128], index: 2, kind: input, shape index: {}]
  %s3 = inlined_call_operand.hbm [shape: bf16[3,128,128], index: 3, kind: input, shape index: {}]
  %s4 = inlined_call_operand.vmem [shape: f32[3,1,128], index: 4, kind: input, shape index: {}]
  %s5 = inlined_call_operand.vmem [shape: f32[1,128], index: 5, kind: input, shape index: {}]
  %s6 = inlined_call_operand.vmem [shape: f32[1,128], index: 6, kind: input, shape index: {}]
  %s7 = inlined_call_operand.hbm [shape: f32[256,128], index: 7, kind: output, shape index: {}]
  %s8 = sld [smem:[#allocation0]]
  $region73: #{tpu_custom_call.1} parent=0
    _
  %s10 = ssub.s32 1, %s8
  %s11 = scalar_select 0, %s10, %s8
  $region1: #{tpu_custom_call.1} parent=0
    #allocation4 [shape = 'u8[98304]{0}', space=vmem, size = 0x18000, scoped, tag = 'input window, operand 3, single buffered']
    #allocation5 [shape = 's32[2]{0}', space=sflag, size = 0x8, scoped, tag = 'scoped memory for tpu_custom_call.1']
    #allocation6 [shape = 's32[2]{0}', space=sflag, size = 0x8, scoped, tag = 'scoped memory for tpu_custom_call.1']
    #allocation7 [shape = 'u8[131072]{0}', space=vmem, size = 0x20000, scoped, tag = 'output window, operand 0']
    %12 = vsyncpa [#allocation5], 0
    %13 = vsyncpa [#allocation6], 0
    %s14 = scalar_lea.sflag [#allocation6], 1
    %15 = vsyncpa %s14, 0
    loop: start=0, step=1, limit=8
    $region2: #{tpu_custom_call.1} parent=1 // loop_pre_header
      _
    $region3: #{tpu_custom_call.1} parent=1 // loop_header
      %s17 = sphi 0, %s21
      %p18 = scmp.ge.s32.totalorder %s17, 8
      %s24 = sphi 0, %s36
      %s25 = sphi 0, %s32
      %s26 = sphi 0, %s24
      %s27 = sphi 0, %s25
      %s28 = sphi 0, %s26
      %s29 = sphi 0, %s27
      %s41 = sphi 0, %s43
      %s44 = sphi 0, %s41
      %s45 = sphi 0, %s44
      %s61 = sphi 0, %s45
      %s69 = sphi 0, %s71
      %s72 = sphi 0, %s69
      %s73 = sphi 0, %s72
      %s89 = sphi 0, %s73
      %s93 = sphi 0, %s93
      %s95 = sphi 0, %s93
      %s96 = sphi 0, %s95
      %s110 = sphi 0, %s96
      %s114 = sphi 0, %s114
      %s116 = sphi 0, %s114
      %s117 = sphi 0, %s116
      %s131 = sphi 0, %s117
      %s135 = sphi 0, %s135
      %s137 = sphi 0, %s135
      %s138 = sphi 0, %s137
      %s152 = sphi 0, %s138
      %s156 = sphi 0, %s156
      %s158 = sphi 0, %s156
      %s159 = sphi 0, %s158
      %s173 = sphi 0, %s159
      %s177 = sphi 0, %s177
      %s179 = sphi 0, %s177
      %s180 = sphi 0, %s179
      %s194 = sphi 0, %s180
      %s200 = sphi 0, %s202
      %s203 = sphi 0, %s200
      %s204 = sphi 0, %s203
      %s220 = sphi 0, %s204
    $region4: #{tpu_custom_call.1} parent=1 // loop_header_branch
      %20 = sbr.rel (%p18) target = $region8
    $region5: #{tpu_custom_call.1} parent=1 // loop_body
      %s22 = ssub.s32 %s17, 1
      %s23 = ssub.s32 %s17, 2
      %s30 = sadd.s32 1, %s25
      %p31 = scmp.ge.s32.totalorder %s30, 3
      %s32 = scalar_select %p31, 0, %s30
      %s33 = sadd.s32 1, %s24
      %s34 = scalar_select %p31, %s33, %s24
      %p35 = scmp.ge.s32.totalorder %s34, 2
      %s36 = scalar_select %p35, 0, %s34
      %s37 = ssub.s32 %s25, %s32
      %s38 = ssub.s32 %s24, %s36
      %s39 = sor.u32 %s37, %s38
      %p40 = scmp.eq.s32.totalorder %s39, 0
      %s42 = sadd.s32 %s41, 1
      %s43 = scalar_select %p40, %s41, %s42
      %p46 = pneg %p40
      %p47 = scmp.eq.s32.totalorder %s17, 5
      %p48 = por %p46, %p47
      %p49 = scmp.ne.s32.totalorder %s41, %s44
      %p50 = scmp.eq.s32.totalorder %s17, 0
      %p51 = por %p49, %p50
      %p52 = scmp.ne.s32.totalorder %s41, %s44
      %p53 = scmp.eq.s32.totalorder %s22, 5
      %p54 = por %p52, %p53
      %p55 = scmp.ne.s32.totalorder %s44, %s45
      %p56 = scmp.eq.s32.totalorder %s22, 0
      %p57 = por %p55, %p56
      %p58 = scmp.ne.s32.totalorder %s44, %s45
      %p59 = scmp.eq.s32.totalorder %s23, 5
      %p60 = por %p58, %p59
      %p62 = scmp.ne.s32.totalorder %s45, %s61
      %p63 = scmp.eq.s32.totalorder %s23, 0
      %p64 = por %p62, %p63
      %s65 = ssub.s32 %s25, %s32
      %s66 = ssub.s32 %s24, %s36
      %s67 = sor.u32 %s65, %s66
      %p68 = scmp.eq.s32.totalorder %s67, 0
      %s70 = sadd.s32 %s69, 1
      %s71 = scalar_select %p68, %s69, %s70
      %p74 = pneg %p68
      %p75 = scmp.eq.s32.totalorder %s17, 5
      %p76 = por %p74, %p75
      %p77 = scmp.ne.s32.totalorder %s69, %s72
      %p78 = scmp.eq.s32.totalorder %s17, 0
      %p79 = por %p77, %p78
      %p80 = scmp.ne.s32.totalorder %s69, %s72
      %p81 = scmp.eq.s32.totalorder %s22, 5
      %p82 = por %p80, %p81
      %p83 = scmp.ne.s32.totalorder %s72, %s73
      %p84 = scmp.eq.s32.totalorder %s22, 0
      %p85 = por %p83, %p84
      %p86 = scmp.ne.s32.totalorder %s72, %s73
      %p87 = scmp.eq.s32.totalorder %s23, 5
      %p88 = por %p86, %p87
      %p90 = scmp.ne.s32.totalorder %s73, %s89
      %p91 = scmp.eq.s32.totalorder %s23, 0
      %p92 = por %p90, %p91
      %s94 = sadd.s32 %s93, 1
      %p97 = scmp.eq.s32.totalorder %s17, 5
      %p98 = scmp.ne.s32.totalorder %s93, %s95
      %p99 = scmp.eq.s32.totalorder %s17, 0
      %p100 = por %p98, %p99
      %p101 = scmp.ne.s32.totalorder %s93, %s95
      %p102 = scmp.eq.s32.totalorder %s22, 5
      %p103 = por %p101, %p102
      %p104 = scmp.ne.s32.totalorder %s95, %s96
      %p105 = scmp.eq.s32.totalorder %s22, 0
      %p106 = por %p104, %p105
      %p107 = scmp.ne.s32.totalorder %s95, %s96
      %p108 = scmp.eq.s32.totalorder %s23, 5
      %p109 = por %p107, %p108
      %p111 = scmp.ne.s32.totalorder %s96, %s110
      %p112 = scmp.eq.s32.totalorder %s23, 0
      %p113 = por %p111, %p112
      %s115 = sadd.s32 %s114, 1
      %p118 = scmp.eq.s32.totalorder %s17, 5
      %p119 = scmp.ne.s32.totalorder %s114, %s116
      %p120 = scmp.eq.s32.totalorder %s17, 0
      %p121 = por %p119, %p120
      %p122 = scmp.ne.s32.totalorder %s114, %s116
      %p123 = scmp.eq.s32.totalorder %s22, 5
      %p124 = por %p122, %p123
      %p125 = scmp.ne.s32.totalorder %s116, %s117
      %p126 = scmp.eq.s32.totalorder %s22, 0
      %p127 = por %p125, %p126
      %p128 = scmp.ne.s32.totalorder %s116, %s117
      %p129 = scmp.eq.s32.totalorder %s23, 5
      %p130 = por %p128, %p129
      %p132 = scmp.ne.s32.totalorder %s117, %s131
      %p133 = scmp.eq.s32.totalorder %s23, 0
      %p134 = por %p132, %p133
      %s136 = sadd.s32 %s135, 1
      %p139 = scmp.eq.s32.totalorder %s17, 5
      %p140 = scmp.ne.s32.totalorder %s135, %s137
      %p141 = scmp.eq.s32.totalorder %s17, 0
      %p142 = por %p140, %p141
      %p143 = scmp.ne.s32.totalorder %s135, %s137
      %p144 = scmp.eq.s32.totalorder %s22, 5
      %p145 = por %p143, %p144
      %p146 = scmp.ne.s32.totalorder %s137, %s138
      %p147 = scmp.eq.s32.totalorder %s22, 0
      %p148 = por %p146, %p147
      %p149 = scmp.ne.s32.totalorder %s137, %s138
      %p150 = scmp.eq.s32.totalorder %s23, 5
      %p151 = por %p149, %p150
      %p153 = scmp.ne.s32.totalorder %s138, %s152
      %p154 = scmp.eq.s32.totalorder %s23, 0
      %p155 = por %p153, %p154
      %s157 = sadd.s32 %s156, 1
      %p160 = scmp.eq.s32.totalorder %s17, 5
      %p161 = scmp.ne.s32.totalorder %s156, %s158
      %p162 = scmp.eq.s32.totalorder %s17, 0
      %p163 = por %p161, %p162
      %p164 = scmp.ne.s32.totalorder %s156, %s158
      %p165 = scmp.eq.s32.totalorder %s22, 5
      %p166 = por %p164, %p165
      %p167 = scmp.ne.s32.totalorder %s158, %s159
      %p168 = scmp.eq.s32.totalorder %s22, 0
      %p169 = por %p167, %p168
      %p170 = scmp.ne.s32.totalorder %s158, %s159
      %p171 = scmp.eq.s32.totalorder %s23, 5
      %p172 = por %p170, %p171
      %p174 = scmp.ne.s32.totalorder %s159, %s173
      %p175 = scmp.eq.s32.totalorder %s23, 0
      %p176 = por %p174, %p175
      %s178 = sadd.s32 %s177, 1
      %p181 = scmp.eq.s32.totalorder %s17, 5
      %p182 = scmp.ne.s32.totalorder %s177, %s179
      %p183 = scmp.eq.s32.totalorder %s17, 0
      %p184 = por %p182, %p183
      %p185 = scmp.ne.s32.totalorder %s177, %s179
      %p186 = scmp.eq.s32.totalorder %s22, 5
      %p187 = por %p185, %p186
      %p188 = scmp.ne.s32.totalorder %s179, %s180
      %p189 = scmp.eq.s32.totalorder %s22, 0
      %p190 = por %p188, %p189
      %p191 = scmp.ne.s32.totalorder %s179, %s180
      %p192 = scmp.eq.s32.totalorder %s23, 5
      %p193 = por %p191, %p192
      %p195 = scmp.ne.s32.totalorder %s180, %s194
      %p196 = scmp.eq.s32.totalorder %s23, 0
      %p197 = por %p195, %p196
      %s198 = ssub.s32 %s24, %s36
      %p199 = scmp.eq.s32.totalorder %s198, 0
      %s201 = sadd.s32 %s200, 1
      %s202 = scalar_select %p199, %s200, %s201
      %p205 = pneg %p199
      %p206 = scmp.eq.s32.totalorder %s17, 5
      %p207 = por %p205, %p206
      %p208 = scmp.ne.s32.totalorder %s200, %s203
      %p209 = scmp.eq.s32.totalorder %s17, 0
      %p210 = por %p208, %p209
      %p211 = scmp.ne.s32.totalorder %s200, %s203
      %p212 = scmp.eq.s32.totalorder %s22, 5
      %p213 = por %p211, %p212
      %p214 = scmp.ne.s32.totalorder %s203, %s204
      %p215 = scmp.eq.s32.totalorder %s22, 0
      %p216 = por %p214, %p215
      %p217 = scmp.ne.s32.totalorder %s203, %s204
      %p218 = scmp.eq.s32.totalorder %s23, 5
      %p219 = por %p217, %p218
      %p221 = scmp.ne.s32.totalorder %s204, %s220
      %p222 = scmp.eq.s32.totalorder %s23, 0
      %p223 = por %p221, %p222
      %p224 = scmp.le.s32.totalorder 1, %s17
      %p225 = scmp.lt.s32.totalorder %s17, 7
      %p226 = pnand %p224, %p225
      %p227 = pneg %p226
      // Predicated region
      $region9: #{tpu_custom_call.1} parent=5 // pred_check
        _
      $region10: #{tpu_custom_call.1} parent=5 // pred_check_branch
        %229 = sbr.rel (%p226) target = $region12
      $region11: #{tpu_custom_call.1} parent=5 // pred_region
        %s230 = ssub.s32 %s17, 1
        // Predicated region
        $region13: #{tpu_custom_call.1} parent=11 // pred_check
          %p231 = pneg %p106
        $region14: #{tpu_custom_call.1} parent=11 // pred_check_branch
          %233 = sbr.rel (%p231) target = $region16
        $region15: #{tpu_custom_call.1} parent=11 // pred_region
          _
        $region16: #{tpu_custom_call.1} parent=11 // pred_fallthru
          _
        // Predicated region
        $region17: #{tpu_custom_call.1} parent=11 // pred_check
          %p234 = pneg %p127
        $region18: #{tpu_custom_call.1} parent=11 // pred_check_branch
          %236 = sbr.rel (%p234) target = $region20
        $region19: #{tpu_custom_call.1} parent=11 // pred_region
          %238 = vsyncadd [#allocation5], 0
          %s239 = sshll.u32 %s3, 4
          %s240 = int_to_ptr.hbm [resolvable:$true] %s239
          %s241 = sshll.u32 [#allocation4], 4
          %s242 = int_to_ptr.vmem [resolvable:$true] %s241
          %247 = dma.hbm_to_vmem [thread:$0]  %s240, 3072, %s242, [#allocation5], 64, 64, 4
        $region20: #{tpu_custom_call.1} parent=11 // pred_fallthru
          _
        // Predicated region
        $region21: #{tpu_custom_call.1} parent=11 // pred_check
          %p248 = pneg %p148
        $region22: #{tpu_custom_call.1} parent=11 // pred_check_branch
          %250 = sbr.rel (%p248) target = $region24
        $region23: #{tpu_custom_call.1} parent=11 // pred_region
          _
        $region24: #{tpu_custom_call.1} parent=11 // pred_fallthru
          _
        // Predicated region
        $region25: #{tpu_custom_call.1} parent=11 // pred_check
          %p251 = pneg %p169
        $region26: #{tpu_custom_call.1} parent=11 // pred_check_branch
          %253 = sbr.rel (%p251) target = $region28
        $region27: #{tpu_custom_call.1} parent=11 // pred_region
          _
        $region28: #{tpu_custom_call.1} parent=11 // pred_fallthru
          _
        // Predicated region
        $region29: #{tpu_custom_call.1} parent=11 // pred_check
          %p254 = pneg %p190
        $region30: #{tpu_custom_call.1} parent=11 // pred_check_branch
          %256 = sbr.rel (%p254) target = $region32
        $region31: #{tpu_custom_call.1} parent=11 // pred_region
          _
        $region32: #{tpu_custom_call.1} parent=11 // pred_fallthru
          _
      $region12: #{tpu_custom_call.1} parent=5 // pred_fallthru
        _
      %p257 = scmp.lt.s32.totalorder %s17, 6
      // Predicated region
      $region33: #{tpu_custom_call.1} parent=5 // pred_check
        %p258 = pneg %p257
      $region34: #{tpu_custom_call.1} parent=5 // pred_check_branch
        %260 = sbr.rel (%p258) target = $region36
      $region35: #{tpu_custom_call.1} parent=5 // pred_region
        // Predicated region
        $region37: #{tpu_custom_call.1} parent=35 // pred_check
          %p261 = pneg %p51
        $region38: #{tpu_custom_call.1} parent=35 // pred_check_branch
          %263 = sbr.rel (%p261) target = $region40
        $region39: #{tpu_custom_call.1} parent=35 // pred_region
          %s264 = smul.u32 16, %s24
          %p265 = scmp.lt.s32.totalorder %s25, 2
          %s266 = scalar_select %p265, %s25, 2
          %p267 = scmp.lt.s32.totalorder %s264, 31
          %s268 = scalar_select %p267, %s264, 31
          %s269 = smul.addr %s266, 32
          %s270 = sadd.s32 %s268, %s269
          %s271 = smul.addr %s270, 8
          %s272 = scalar_lea.vmem %s0, %s271
          %s273 = smul.u32 16, %s24
        $region40: #{tpu_custom_call.1} parent=35 // pred_fallthru
          _
        // Predicated region
        $region41: #{tpu_custom_call.1} parent=35 // pred_check
          %p274 = pneg %p79
        $region42: #{tpu_custom_call.1} parent=35 // pred_check_branch
          %276 = sbr.rel (%p274) target = $region44
        $region43: #{tpu_custom_call.1} parent=35 // pred_region
          %s277 = smul.u32 4, %s24
          %p278 = scmp.lt.s32.totalorder %s25, 2
          %s279 = scalar_select %p278, %s25, 2
          %p280 = scmp.lt.s32.totalorder %s277, 7
          %s281 = scalar_select %p280, %s277, 7
          %s282 = smul.addr %s281, 2
          %s283 = smul.addr %s279, 16
          %s284 = sadd.s32 %s282, %s283
          %s285 = smul.addr %s284, 8
          %s286 = scalar_lea.vmem %s1, %s285
          %s287 = smul.u32 4, %s24
        $region44: #{tpu_custom_call.1} parent=35 // pred_fallthru
          _
      $region36: #{tpu_custom_call.1} parent=5 // pred_fallthru
        _
      %p288 = scmp.le.s32.totalorder 1, %s17
      %p289 = scmp.lt.s32.totalorder %s17, 7
      %p290 = pnand %p288, %p289
      %p291 = pneg %p290
      // Predicated region
      $region45: #{tpu_custom_call.1} parent=5 // pred_check
        _
      $region46: #{tpu_custom_call.1} parent=5 // pred_check_branch
        %293 = sbr.rel (%p290) target = $region48
      $region47: #{tpu_custom_call.1} parent=5 // pred_region
        %s294 = ssub.s32 %s17, 1
        // Predicated region
        $region49: #{tpu_custom_call.1} parent=47 // pred_check
          %p295 = pneg %p127
        $region50: #{tpu_custom_call.1} parent=47 // pred_check_branch
          %297 = sbr.rel (%p295) target = $region52
        $region51: #{tpu_custom_call.1} parent=47 // pred_region
          %299 = dma.done [#allocation5], 3072
        $region52: #{tpu_custom_call.1} parent=47 // pred_fallthru
          _
        %s300 = smul.u32 16, %s26
        %p301 = scmp.lt.s32.totalorder %s27, 2
        %s302 = scalar_select %p301, %s27, 2
        %p303 = scmp.lt.s32.totalorder %s300, 31
        %s304 = scalar_select %p303, %s300, 31
        %s305 = smul.addr %s302, 32
        %s306 = sadd.s32 %s304, %s305
        %s307 = smul.addr %s306, 8
        %s308 = scalar_lea.vmem %s0, %s307
        %p309 = pneg %p57
        %p310 = pneg %p54
        %s311 = smul.u32 4, %s26
        %p312 = scmp.lt.s32.totalorder %s27, 2
        %s313 = scalar_select %p312, %s27, 2
        %p314 = scmp.lt.s32.totalorder %s311, 7
        %s315 = scalar_select %p314, %s311, 7
        %s316 = smul.addr %s315, 2
        %s317 = smul.addr %s313, 16
        %s318 = sadd.s32 %s316, %s317
        %s319 = smul.addr %s318, 8
        %s320 = scalar_lea.vmem %s1, %s319
        %p321 = pneg %p85
        %p322 = pneg %p82
        %p323 = pneg %p106
        %p324 = pneg %p103
        %p325 = pneg %p127
        %p326 = pneg %p124
        %p327 = pneg %p148
        %p328 = pneg %p145
        %p329 = pneg %p169
        %p330 = pneg %p166
        %p331 = pneg %p190
        %p332 = pneg %p187
        %p333 = pneg %p216
        %p334 = pneg %p213
        %s335 = sand.u32 %s203, 1
        %s336 = scalar_lea.sflag [#allocation6], %s335
        %s337 = sand.u32 %s203, 1
        %s338 = smul.addr %s337, 128
        %s339 = scalar_lea.vmem [#allocation7], %s338
        %s340 = smul.u32 16, %s26
        %p341 = scmp.lt.s32.totalorder %s27, 2
        %s342 = scalar_select %p341, %s27, 2
        %p343 = scmp.lt.s32.totalorder %s340, 31
        %s344 = scalar_select %p343, %s340, 31
        %s345 = smul.addr %s342, 32
        %s346 = sadd.s32 %s344, %s345
        %s347 = smul.addr %s346, 8
        %s348 = scalar_lea.vmem %s0, %s347
        %s349 = smul.u32 16, %s26
        %s350 = smul.u32 4, %s26
        %p351 = scmp.lt.s32.totalorder %s27, 2
        %s352 = scalar_select %p351, %s27, 2
        %p353 = scmp.lt.s32.totalorder %s350, 7
        %s354 = scalar_select %p353, %s350, 7
        %s355 = smul.addr %s354, 2
        %s356 = smul.addr %s352, 16
        %s357 = sadd.s32 %s355, %s356
        %s358 = smul.addr %s357, 8
        %s359 = scalar_lea.vmem %s1, %s358
        %s360 = smul.u32 4, %s26
        %s361 = smul.u32 16, %s26
        %p362 = scmp.eq.s32.totalorder %s27, 0
        // Predicated region
        $region53: #{tpu_custom_call.1} parent=47 // pred_check
          %p363 = pneg %p362
        $region54: #{tpu_custom_call.1} parent=47 // pred_check_branch
          %365 = sbr.rel (%p363) target = $region56
        $region55: #{tpu_custom_call.1} parent=47 // pred_region
          %366 = vst [vmem:[#allocation2] sm:$0xff] -inf
          %367 = vst [vmem:[#allocation2 + $0x8] sm:$0xff] -inf
          %368 = vst [vmem:[#allocation2 + $0x10] sm:$0xff] -inf
          %369 = vst [vmem:[#allocation2 + $0x18] sm:$0xff] -inf
          %370 = vst [vmem:[#allocation2 + $0x20] sm:$0xff] -inf
          %371 = vst [vmem:[#allocation2 + $0x28] sm:$0xff] -inf
          %372 = vst [vmem:[#allocation2 + $0x30] sm:$0xff] -inf
          %373 = vst [vmem:[#allocation2 + $0x38] sm:$0xff] -inf
          %374 = vst [vmem:[#allocation2 + $0x40] sm:$0xff] -inf
          %375 = vst [vmem:[#allocation2 + $0x48] sm:$0xff] -inf
          %376 = vst [vmem:[#allocation2 + $0x50] sm:$0xff] -inf
          %377 = vst [vmem:[#allocation2 + $0x58] sm:$0xff] -inf
          %378 = vst [vmem:[#allocation2 + $0x60] sm:$0xff] -inf
          %379 = vst [vmem:[#allocation2 + $0x68] sm:$0xff] -inf
          %380 = vst [vmem:[#allocation2 + $0x70] sm:$0xff] -inf
          %381 = vst [vmem:[#allocation2 + $0x78] sm:$0xff] -inf
          %382 = vst [vmem:[#allocation3] sm:$0xff] 0.0
          %383 = vst [vmem:[#allocation3 + $0x8] sm:$0xff] 0.0
          %384 = vst [vmem:[#allocation3 + $0x10] sm:$0xff] 0.0
          %385 = vst [vmem:[#allocation3 + $0x18] sm:$0xff] 0.0
          %386 = vst [vmem:[#allocation3 + $0x20] sm:$0xff] 0.0
          %387 = vst [vmem:[#allocation3 + $0x28] sm:$0xff] 0.0
          %388 = vst [vmem:[#allocation3 + $0x30] sm:$0xff] 0.0
          %389 = vst [vmem:[#allocation3 + $0x38] sm:$0xff] 0.0
          %390 = vst [vmem:[#allocation3 + $0x40] sm:$0xff] 0.0
          %391 = vst [vmem:[#allocation3 + $0x48] sm:$0xff] 0.0
          %392 = vst [vmem:[#allocation3 + $0x50] sm:$0xff] 0.0
          %393 = vst [vmem:[#allocation3 + $0x58] sm:$0xff] 0.0
          %394 = vst [vmem:[#allocation3 + $0x60] sm:$0xff] 0.0
          %395 = vst [vmem:[#allocation3 + $0x68] sm:$0xff] 0.0
          %396 = vst [vmem:[#allocation3 + $0x70] sm:$0xff] 0.0
          %397 = vst [vmem:[#allocation3 + $0x78] sm:$0xff] 0.0
        $region56: #{tpu_custom_call.1} parent=47 // pred_fallthru
          _
        %v398 = vld [vmem:[%s359] sm:$0xff]
        %v399 = vld [vmem:[%s359 + $0x8] sm:$0xff]
        %v400 = vld [vmem:[%s359 + $0x10] sm:$0xff]
        %v401 = vld [vmem:[%s359 + $0x18] sm:$0xff]
        %v402 = vld [vmem:[%s359 + $0x20] sm:$0xff]
        %v403 = vld [vmem:[%s359 + $0x28] sm:$0xff]
        %v404 = vld [vmem:[%s359 + $0x30] sm:$0xff]
        %v405 = vld [vmem:[%s359 + $0x38] sm:$0xff]
        %v406 = vunpack.c.0.s8 %v398
        %v407 = vunpack.c.0.s8 %v399
        %v408 = vunpack.c.1.s8 %v398
        %v409 = vunpack.c.1.s8 %v399
        %v410 = vunpack.c.2.s8 %v398
        %v411 = vunpack.c.2.s8 %v399
        %v412 = vunpack.c.3.s8 %v398
        %v413 = vunpack.c.3.s8 %v399
        %v414 = vunpack.c.0.s8 %v400
        %v415 = vunpack.c.0.s8 %v401
        %v416 = vunpack.c.1.s8 %v400
        %v417 = vunpack.c.1.s8 %v401
        %v418 = vunpack.c.2.s8 %v400
        %v419 = vunpack.c.2.s8 %v401
        %v420 = vunpack.c.3.s8 %v400
        %v421 = vunpack.c.3.s8 %v401
        %v422 = vunpack.c.0.s8 %v402
        %v423 = vunpack.c.0.s8 %v403
        %v424 = vunpack.c.1.s8 %v402
        %v425 = vunpack.c.1.s8 %v403
        %v426 = vunpack.c.2.s8 %v402
        %v427 = vunpack.c.2.s8 %v403
        %v428 = vunpack.c.3.s8 %v402
        %v429 = vunpack.c.3.s8 %v403
        %v430 = vunpack.c.0.s8 %v404
        %v431 = vunpack.c.0.s8 %v405
        %v432 = vunpack.c.1.s8 %v404
        %v433 = vunpack.c.1.s8 %v405
        %v434 = vunpack.c.2.s8 %v404
        %v435 = vunpack.c.2.s8 %v405
        %v436 = vunpack.c.3.s8 %v404
        %v437 = vunpack.c.3.s8 %v405
        %v438 = vcvt.s32.f32 %v406
        %v439 = vcvt.s32.f32 %v407
        %v440 = vcvt.s32.f32 %v408
        %v441 = vcvt.s32.f32 %v409
        %v442 = vcvt.s32.f32 %v410
        %v443 = vcvt.s32.f32 %v411
        %v444 = vcvt.s32.f32 %v412
        %v445 = vcvt.s32.f32 %v413
        %v446 = vcvt.s32.f32 %v414
        %v447 = vcvt.s32.f32 %v415
        %v448 = vcvt.s32.f32 %v416
        %v449 = vcvt.s32.f32 %v417
        %v450 = vcvt.s32.f32 %v418
        %v451 = vcvt.s32.f32 %v419
        %v452 = vcvt.s32.f32 %v420
        %v453 = vcvt.s32.f32 %v421
        %v454 = vcvt.s32.f32 %v422
        %v455 = vcvt.s32.f32 %v423
        %v456 = vcvt.s32.f32 %v424
        %v457 = vcvt.s32.f32 %v425
        %v458 = vcvt.s32.f32 %v426
        %v459 = vcvt.s32.f32 %v427
        %v460 = vcvt.s32.f32 %v428
        %v461 = vcvt.s32.f32 %v429
        %v462 = vcvt.s32.f32 %v430
        %v463 = vcvt.s32.f32 %v431
        %v464 = vcvt.s32.f32 %v432
        %v465 = vcvt.s32.f32 %v433
        %v466 = vcvt.s32.f32 %v434
        %v467 = vcvt.s32.f32 %v435
        %v468 = vcvt.s32.f32 %v436
        %v469 = vcvt.s32.f32 %v437
        %v470 = vpack.c.bf16 %v440, %v438
        %v471 = vpack.c.bf16 %v441, %v439
        %v472 = vpack.c.bf16 %v444, %v442
        %v473 = vpack.c.bf16 %v445, %v443
        %v474 = vpack.c.bf16 %v448, %v446
        %v475 = vpack.c.bf16 %v449, %v447
        %v476 = vpack.c.bf16 %v452, %v450
        %v477 = vpack.c.bf16 %v453, %v451
        %v478 = vpack.c.bf16 %v456, %v454
        %v479 = vpack.c.bf16 %v457, %v455
        %v480 = vpack.c.bf16 %v460, %v458
        %v481 = vpack.c.bf16 %v461, %v459
        %v482 = vpack.c.bf16 %v464, %v462
        %v483 = vpack.c.bf16 %v465, %v463
        %v484 = vpack.c.bf16 %v468, %v466
        %v485 = vpack.c.bf16 %v469, %v467
        %s486 = smul.u32 %s27, 32
        %s487 = smul.addr %s486, 4
        %s488 = scalar_lea.vmem %s2, %s487
        %v489 = vld [vmem:[%s488] sm:$0xf]
        %v490 = vld [vmem:[%s488 + $0x4] sm:$0xf]
        %v491 = vld [vmem:[%s488 + $0x8] sm:$0xf]
        %v492 = vld [vmem:[%s488 + $0xc] sm:$0xf]
        %v493 = vld [vmem:[%s488 + $0x10] sm:$0xf]
        %v494 = vld [vmem:[%s488 + $0x14] sm:$0xf]
        %v495 = vld [vmem:[%s488 + $0x18] sm:$0xf]
        %v496 = vld [vmem:[%s488 + $0x1c] sm:$0xf]
        %v497 = vld [vmem:[%s488 + $0x20] sm:$0xf]
        %v498 = vld [vmem:[%s488 + $0x24] sm:$0xf]
        %v499 = vld [vmem:[%s488 + $0x28] sm:$0xf]
        %v500 = vld [vmem:[%s488 + $0x2c] sm:$0xf]
        %v501 = vld [vmem:[%s488 + $0x30] sm:$0xf]
        %v502 = vld [vmem:[%s488 + $0x34] sm:$0xf]
        %v503 = vld [vmem:[%s488 + $0x38] sm:$0xf]
        %v504 = vld [vmem:[%s488 + $0x3c] sm:$0xf]
        %v505 = vld [vmem:[%s488 + $0x40] sm:$0xf]
        %v506 = vld [vmem:[%s488 + $0x44] sm:$0xf]
        %v507 = vld [vmem:[%s488 + $0x48] sm:$0xf]
        %v508 = vld [vmem:[%s488 + $0x4c] sm:$0xf]
        %v509 = vld [vmem:[%s488 + $0x50] sm:$0xf]
        %v510 = vld [vmem:[%s488 + $0x54] sm:$0xf]
        %v511 = vld [vmem:[%s488 + $0x58] sm:$0xf]
        %v512 = vld [vmem:[%s488 + $0x5c] sm:$0xf]
        %v513 = vld [vmem:[%s488 + $0x60] sm:$0xf]
        %v514 = vld [vmem:[%s488 + $0x64] sm:$0xf]
        %v515 = vld [vmem:[%s488 + $0x68] sm:$0xf]
        %v516 = vld [vmem:[%s488 + $0x6c] sm:$0xf]
        %v517 = vld [vmem:[%s488 + $0x70] sm:$0xf]
        %v518 = vld [vmem:[%s488 + $0x74] sm:$0xf]
        %v519 = vld [vmem:[%s488 + $0x78] sm:$0xf]
        %v520 = vld [vmem:[%s488 + $0x7c] sm:$0xf]
        %v553 = vunpack.c.l.b16 %v489
        %v554 = vunpack.c.l.b16 %v490
        %v555 = vunpack.c.l.b16 %v491
        %v556 = vunpack.c.l.b16 %v492
        %v557 = vunpack.c.l.b16 %v493
        %v558 = vunpack.c.l.b16 %v494
        %v559 = vunpack.c.l.b16 %v495
        %v560 = vunpack.c.l.b16 %v496
        %v561 = vunpack.c.l.b16 %v497
        %v562 = vunpack.c.l.b16 %v498
        %v563 = vunpack.c.l.b16 %v499
        %v564 = vunpack.c.l.b16 %v500
        %v565 = vunpack.c.l.b16 %v501
        %v566 = vunpack.c.l.b16 %v502
        %v567 = vunpack.c.l.b16 %v503
        %v568 = vunpack.c.l.b16 %v504
        %v569 = vunpack.c.l.b16 %v505
        %v570 = vunpack.c.l.b16 %v506
        %v571 = vunpack.c.l.b16 %v507
        %v572 = vunpack.c.l.b16 %v508
        %v573 = vunpack.c.l.b16 %v509
        %v574 = vunpack.c.l.b16 %v510
        %v575 = vunpack.c.l.b16 %v511
        %v576 = vunpack.c.l.b16 %v512
        %v577 = vunpack.c.l.b16 %v513
        %v578 = vunpack.c.l.b16 %v514
        %v579 = vunpack.c.l.b16 %v515
        %v580 = vunpack.c.l.b16 %v516
        %v581 = vunpack.c.l.b16 %v517
        %v582 = vunpack.c.l.b16 %v518
        %v583 = vunpack.c.l.b16 %v519
        %v584 = vunpack.c.l.b16 %v520
        %v585 = vpack.c.b16 %v554, %v553
        %v586 = vpack.c.b16 %v556, %v555
        %v587 = vpack.c.b16 %v558, %v557
        %v588 = vpack.c.b16 %v560, %v559
        %v589 = vpack.c.b16 %v562, %v561
        %v590 = vpack.c.b16 %v564, %v563
        %v591 = vpack.c.b16 %v566, %v565
        %v592 = vpack.c.b16 %v568, %v567
        %v593 = vpack.c.b16 %v570, %v569
        %v594 = vpack.c.b16 %v572, %v571
        %v595 = vpack.c.b16 %v574, %v573
        %v596 = vpack.c.b16 %v576, %v575
        %v597 = vpack.c.b16 %v578, %v577
        %v598 = vpack.c.b16 %v580, %v579
        %v599 = vpack.c.b16 %v582, %v581
        %v600 = vpack.c.b16 %v584, %v583
        %617 = vmatpush.bf16.msra.mxu0 %v592
        %618 = vmatpush.bf16.msra.mxu0 %v591
        %619 = vmatpush.bf16.msra.mxu0 %v590
        %620 = vmatpush.bf16.msra.mxu0 %v589
        %621 = vmatpush.bf16.msra.mxu0 %v588
        %622 = vmatpush.bf16.msra.mxu0 %v587
        %623 = vmatpush.bf16.msra.mxu0 %v586
        %624 = vmatpush.bf16.msra.mxu0 %v585
        %625 = vmatmul.bf16.gmra.mxu0 %v470
        %v626 = vpop.f32.mrf.mxu0
        %v627 = vadd.f32 0.0, %v626
        %v628 = vpop.f32.mrf.mxu0
        %v629 = vadd.f32 0.0, %v628
        %630 = vmatmul.bf16.gmra.mxu0 %v472
        %v631 = vpop.f32.mrf.mxu0
        %v632 = vadd.f32 0.0, %v631
        %v633 = vpop.f32.mrf.mxu0
        %v634 = vadd.f32 0.0, %v633
        %635 = vmatmul.bf16.gmra.mxu0 %v474
        %v636 = vpop.f32.mrf.mxu0
        %v637 = vadd.f32 0.0, %v636
        %v638 = vpop.f32.mrf.mxu0
        %v639 = vadd.f32 0.0, %v638
        %640 = vmatmul.bf16.gmra.mxu0 %v476
        %v641 = vpop.f32.mrf.mxu0
        %v642 = vadd.f32 0.0, %v641
        %v643 = vpop.f32.mrf.mxu0
        %v644 = vadd.f32 0.0, %v643
        %645 = vmatmul.bf16.gmra.mxu0 %v478
        %v646 = vpop.f32.mrf.mxu0
        %v647 = vadd.f32 0.0, %v646
        %v648 = vpop.f32.mrf.mxu0
        %v649 = vadd.f32 0.0, %v648
        %650 = vmatmul.bf16.gmra.mxu0 %v480
        %v651 = vpop.f32.mrf.mxu0
        %v652 = vadd.f32 0.0, %v651
        %v653 = vpop.f32.mrf.mxu0
        %v654 = vadd.f32 0.0, %v653
        %655 = vmatmul.bf16.gmra.mxu0 %v482
        %v656 = vpop.f32.mrf.mxu0
        %v657 = vadd.f32 0.0, %v656
        %v658 = vpop.f32.mrf.mxu0
        %v659 = vadd.f32 0.0, %v658
        %660 = vmatmul.bf16.gmra.mxu0 %v484
        %v661 = vpop.f32.mrf.mxu0
        %v662 = vadd.f32 0.0, %v661
        %v663 = vpop.f32.mrf.mxu0
        %v664 = vadd.f32 0.0, %v663
        %665 = vdwg.mxu0
        %666 = vmatpush.bf16.msra.mxu0 %v600
        %667 = vmatpush.bf16.msra.mxu0 %v599
        %668 = vmatpush.bf16.msra.mxu0 %v598
        %669 = vmatpush.bf16.msra.mxu0 %v597
        %670 = vmatpush.bf16.msra.mxu0 %v596
        %671 = vmatpush.bf16.msra.mxu0 %v595
        %672 = vmatpush.bf16.msra.mxu0 %v594
        %673 = vmatpush.bf16.msra.mxu0 %v593
        %674 = vmatmul.bf16.gmra.mxu0 %v471
        %v675 = vpop.f32.mrf.mxu0
        %v676 = vadd.f32 %v627, %v675
        %v677 = vpop.f32.mrf.mxu0
        %v678 = vadd.f32 %v629, %v677
        %679 = vmatmul.bf16.gmra.mxu0 %v473
        %v680 = vpop.f32.mrf.mxu0
        %v681 = vadd.f32 %v632, %v680
        %v682 = vpop.f32.mrf.mxu0
        %v683 = vadd.f32 %v634, %v682
        %684 = vmatmul.bf16.gmra.mxu0 %v475
        %v685 = vpop.f32.mrf.mxu0
        %v686 = vadd.f32 %v637, %v685
        %v687 = vpop.f32.mrf.mxu0
        %v688 = vadd.f32 %v639, %v687
        %689 = vmatmul.bf16.gmra.mxu0 %v477
        %v690 = vpop.f32.mrf.mxu0
        %v691 = vadd.f32 %v642, %v690
        %v692 = vpop.f32.mrf.mxu0
        %v693 = vadd.f32 %v644, %v692
        %694 = vmatmul.bf16.gmra.mxu0 %v479
        %v695 = vpop.f32.mrf.mxu0
        %v696 = vadd.f32 %v647, %v695
        %v697 = vpop.f32.mrf.mxu0
        %v698 = vadd.f32 %v649, %v697
        %699 = vmatmul.bf16.gmra.mxu0 %v481
        %v700 = vpop.f32.mrf.mxu0
        %v701 = vadd.f32 %v652, %v700
        %v702 = vpop.f32.mrf.mxu0
        %v703 = vadd.f32 %v654, %v702
        %704 = vmatmul.bf16.gmra.mxu0 %v483
        %v705 = vpop.f32.mrf.mxu0
        %v706 = vadd.f32 %v657, %v705
        %v707 = vpop.f32.mrf.mxu0
        %v708 = vadd.f32 %v659, %v707
        %709 = vmatmul.bf16.gmra.mxu0 %v485
        %v710 = vpop.f32.mrf.mxu0
        %v711 = vadd.f32 %v662, %v710
        %v712 = vpop.f32.mrf.mxu0
        %v713 = vadd.f32 %v664, %v712
        %714 = vdwg.mxu0
        %v715 = vld [vmem:[%s348] sm:$0xff]
        %v716 = vld [vmem:[%s348 + $0x8] sm:$0xff]
        %v717 = vld [vmem:[%s348 + $0x10] sm:$0xff]
        %v718 = vld [vmem:[%s348 + $0x18] sm:$0xff]
        %v719 = vld [vmem:[%s348 + $0x20] sm:$0xff]
        %v720 = vld [vmem:[%s348 + $0x28] sm:$0xff]
        %v721 = vld [vmem:[%s348 + $0x30] sm:$0xff]
        %v722 = vld [vmem:[%s348 + $0x38] sm:$0xff]
        %v723 = vld [vmem:[%s348 + $0x40] sm:$0xff]
        %v724 = vld [vmem:[%s348 + $0x48] sm:$0xff]
        %v725 = vld [vmem:[%s348 + $0x50] sm:$0xff]
        %v726 = vld [vmem:[%s348 + $0x58] sm:$0xff]
        %v727 = vld [vmem:[%s348 + $0x60] sm:$0xff]
        %v728 = vld [vmem:[%s348 + $0x68] sm:$0xff]
        %v729 = vld [vmem:[%s348 + $0x70] sm:$0xff]
        %v730 = vld [vmem:[%s348 + $0x78] sm:$0xff]
        %732 = vset.pattern.permute.xlu0 0
        %733 = vperm.xlu0 %732, %v715
        %v734 = vpop.permute.xlu0 %733
        %737 = vset.pattern.permute.xlu0 0
        %738 = vperm.xlu0 %737, %v716
        %v739 = vpop.permute.xlu0 %738
        %742 = vset.pattern.permute.xlu0 0
        %743 = vperm.xlu0 %742, %v717
        %v744 = vpop.permute.xlu0 %743
        %747 = vset.pattern.permute.xlu0 0
        %748 = vperm.xlu0 %747, %v718
        %v749 = vpop.permute.xlu0 %748
        %752 = vset.pattern.permute.xlu0 0
        %753 = vperm.xlu0 %752, %v719
        %v754 = vpop.permute.xlu0 %753
        %757 = vset.pattern.permute.xlu0 0
        %758 = vperm.xlu0 %757, %v720
        %v759 = vpop.permute.xlu0 %758
        %762 = vset.pattern.permute.xlu0 0
        %763 = vperm.xlu0 %762, %v721
        %v764 = vpop.permute.xlu0 %763
        %767 = vset.pattern.permute.xlu0 0
        %768 = vperm.xlu0 %767, %v722
        %v769 = vpop.permute.xlu0 %768
        %772 = vset.pattern.permute.xlu0 0
        %773 = vperm.xlu0 %772, %v723
        %v774 = vpop.permute.xlu0 %773
        %777 = vset.pattern.permute.xlu0 0
        %778 = vperm.xlu0 %777, %v724
        %v779 = vpop.permute.xlu0 %778
        %782 = vset.pattern.permute.xlu0 0
        %783 = vperm.xlu0 %782, %v725
        %v784 = vpop.permute.xlu0 %783
        %787 = vset.pattern.permute.xlu0 0
        %788 = vperm.xlu0 %787, %v726
        %v789 = vpop.permute.xlu0 %788
        %792 = vset.pattern.permute.xlu0 0
        %793 = vperm.xlu0 %792, %v727
        %v794 = vpop.permute.xlu0 %793
        %797 = vset.pattern.permute.xlu0 0
        %798 = vperm.xlu0 %797, %v728
        %v799 = vpop.permute.xlu0 %798
        %802 = vset.pattern.permute.xlu0 0
        %803 = vperm.xlu0 %802, %v729
        %v804 = vpop.permute.xlu0 %803
        %807 = vset.pattern.permute.xlu0 0
        %808 = vperm.xlu0 %807, %v730
        %v809 = vpop.permute.xlu0 %808
        %v811 = vmul.f32 %v676, %v734
        %v812 = vmul.f32 %v678, %v739
        %v813 = vmul.f32 %v681, %v744
        %v814 = vmul.f32 %v683, %v749
        %v815 = vmul.f32 %v686, %v754
        %v816 = vmul.f32 %v688, %v759
        %v817 = vmul.f32 %v691, %v764
        %v818 = vmul.f32 %v693, %v769
        %v819 = vmul.f32 %v696, %v774
        %v820 = vmul.f32 %v698, %v779
        %v821 = vmul.f32 %v701, %v784
        %v822 = vmul.f32 %v703, %v789
        %v823 = vmul.f32 %v706, %v794
        %v824 = vmul.f32 %v708, %v799
        %v825 = vmul.f32 %v711, %v804
        %v826 = vmul.f32 %v713, %v809
        %s827 = smul.u32 %s27, 16
        %s828 = smul.addr %s827, 4
        %s829 = scalar_lea.vmem [#allocation4], %s828
        %v830 = vld [vmem:[%s829] sm:$0xf]
        %v831 = vld [vmem:[%s829 + $0x4] sm:$0xf]
        %v832 = vld [vmem:[%s829 + $0x8] sm:$0xf]
        %v833 = vld [vmem:[%s829 + $0xc] sm:$0xf]
        %v834 = vld [vmem:[%s829 + $0x10] sm:$0xf]
        %v835 = vld [vmem:[%s829 + $0x14] sm:$0xf]
        %v836 = vld [vmem:[%s829 + $0x18] sm:$0xf]
        %v837 = vld [vmem:[%s829 + $0x1c] sm:$0xf]
        %v838 = vld [vmem:[%s829 + $0x20] sm:$0xf]
        %v839 = vld [vmem:[%s829 + $0x24] sm:$0xf]
        %v840 = vld [vmem:[%s829 + $0x28] sm:$0xf]
        %v841 = vld [vmem:[%s829 + $0x2c] sm:$0xf]
        %v842 = vld [vmem:[%s829 + $0x30] sm:$0xf]
        %v843 = vld [vmem:[%s829 + $0x34] sm:$0xf]
        %v844 = vld [vmem:[%s829 + $0x38] sm:$0xf]
        %v845 = vld [vmem:[%s829 + $0x3c] sm:$0xf]
        %v846 = vpack.c.bf16 %v812, %v811
        %v847 = vpack.c.bf16 %v814, %v813
        %v848 = vpack.c.bf16 %v816, %v815
        %v849 = vpack.c.bf16 %v818, %v817
        %v850 = vpack.c.bf16 %v820, %v819
        %v851 = vpack.c.bf16 %v822, %v821
        %v852 = vpack.c.bf16 %v824, %v823
        %v853 = vpack.c.bf16 %v826, %v825
        %s854 = scalar_lea.vmem %s4, %s27
        %v855 = vld [vmem:[%s854] sm:$0x1]
        %v857 = vperm.slane %v855, 0
        %v875 = vunpack.c.l.b16 %v830
        %v876 = vunpack.c.l.b16 %v831
        %v877 = vunpack.c.l.b16 %v832
        %v878 = vunpack.c.l.b16 %v833
        %v879 = vunpack.c.l.b16 %v834
        %v880 = vunpack.c.l.b16 %v835
        %v881 = vunpack.c.l.b16 %v836
        %v882 = vunpack.c.l.b16 %v837
        %v883 = vunpack.c.l.b16 %v838
        %v884 = vunpack.c.l.b16 %v839
        %v885 = vunpack.c.l.b16 %v840
        %v886 = vunpack.c.l.b16 %v841
        %v887 = vunpack.c.l.b16 %v842
        %v888 = vunpack.c.l.b16 %v843
        %v889 = vunpack.c.l.b16 %v844
        %v890 = vunpack.c.l.b16 %v845
        %v891 = vpack.c.b16 %v876, %v875
        %v892 = vpack.c.b16 %v878, %v877
        %v893 = vpack.c.b16 %v880, %v879
        %v894 = vpack.c.b16 %v882, %v881
        %v895 = vpack.c.b16 %v884, %v883
        %v896 = vpack.c.b16 %v886, %v885
        %v897 = vpack.c.b16 %v888, %v887
        %v898 = vpack.c.b16 %v890, %v889
        %907 = vmatpush.bf16.msra.mxu0 %v898
        %908 = vmatpush.bf16.msra.mxu0 %v897
        %909 = vmatpush.bf16.msra.mxu0 %v896
        %910 = vmatpush.bf16.msra.mxu0 %v895
        %911 = vmatpush.bf16.msra.mxu0 %v894
        %912 = vmatpush.bf16.msra.mxu0 %v893
        %913 = vmatpush.bf16.msra.mxu0 %v892
        %914 = vmatpush.bf16.msra.mxu0 %v891
        %915 = vmatmul.bf16.gmra.mxu0 %v846
        %v916 = vpop.f32.mrf.mxu0
        %v917 = vadd.f32 %v857, %v916
        %v918 = vpop.f32.mrf.mxu0
        %v919 = vadd.f32 %v857, %v918
        %920 = vmatmul.bf16.gmra.mxu0 %v847
        %v921 = vpop.f32.mrf.mxu0
        %v922 = vadd.f32 %v857, %v921
        %v923 = vpop.f32.mrf.mxu0
        %v924 = vadd.f32 %v857, %v923
        %925 = vmatmul.bf16.gmra.mxu0 %v848
        %v926 = vpop.f32.mrf.mxu0
        %v927 = vadd.f32 %v857, %v926
        %v928 = vpop.f32.mrf.mxu0
        %v929 = vadd.f32 %v857, %v928
        %930 = vmatmul.bf16.gmra.mxu0 %v849
        %v931 = vpop.f32.mrf.mxu0
        %v932 = vadd.f32 %v857, %v931
        %v933 = vpop.f32.mrf.mxu0
        %v934 = vadd.f32 %v857, %v933
        %935 = vmatmul.bf16.gmra.mxu0 %v850
        %v936 = vpop.f32.mrf.mxu0
        %v937 = vadd.f32 %v857, %v936
        %v938 = vpop.f32.mrf.mxu0
        %v939 = vadd.f32 %v857, %v938
        %940 = vmatmul.bf16.gmra.mxu0 %v851
        %v941 = vpop.f32.mrf.mxu0
        %v942 = vadd.f32 %v857, %v941
        %v943 = vpop.f32.mrf.mxu0
        %v944 = vadd.f32 %v857, %v943
        %945 = vmatmul.bf16.gmra.mxu0 %v852
        %v946 = vpop.f32.mrf.mxu0
        %v947 = vadd.f32 %v857, %v946
        %v948 = vpop.f32.mrf.mxu0
        %v949 = vadd.f32 %v857, %v948
        %950 = vmatmul.bf16.gmra.mxu0 %v853
        %v951 = vpop.f32.mrf.mxu0
        %v952 = vadd.f32 %v857, %v951
        %v953 = vpop.f32.mrf.mxu0
        %v954 = vadd.f32 %v857, %v953
        %955 = vdwg.mxu0
        %v956 = vmax.f32 %v917, 0.0
        %v957 = vmax.f32 %v919, 0.0
        %v958 = vmax.f32 %v922, 0.0
        %v959 = vmax.f32 %v924, 0.0
        %v960 = vmax.f32 %v927, 0.0
        %v961 = vmax.f32 %v929, 0.0
        %v962 = vmax.f32 %v932, 0.0
        %v963 = vmax.f32 %v934, 0.0
        %v964 = vmax.f32 %v937, 0.0
        %v965 = vmax.f32 %v939, 0.0
        %v966 = vmax.f32 %v942, 0.0
        %v967 = vmax.f32 %v944, 0.0
        %v968 = vmax.f32 %v947, 0.0
        %v969 = vmax.f32 %v949, 0.0
        %v970 = vmax.f32 %v952, 0.0
        %v971 = vmax.f32 %v954, 0.0
        %v972 = vld [vmem:[#allocation2] sm:$0xff]
        %v973 = vld [vmem:[#allocation2 + $0x8] sm:$0xff]
        %v974 = vld [vmem:[#allocation2 + $0x10] sm:$0xff]
        %v975 = vld [vmem:[#allocation2 + $0x18] sm:$0xff]
        %v976 = vld [vmem:[#allocation2 + $0x20] sm:$0xff]
        %v977 = vld [vmem:[#allocation2 + $0x28] sm:$0xff]
        %v978 = vld [vmem:[#allocation2 + $0x30] sm:$0xff]
        %v979 = vld [vmem:[#allocation2 + $0x38] sm:$0xff]
        %v980 = vld [vmem:[#allocation2 + $0x40] sm:$0xff]
        %v981 = vld [vmem:[#allocation2 + $0x48] sm:$0xff]
        %v982 = vld [vmem:[#allocation2 + $0x50] sm:$0xff]
        %v983 = vld [vmem:[#allocation2 + $0x58] sm:$0xff]
        %v984 = vld [vmem:[#allocation2 + $0x60] sm:$0xff]
        %v985 = vld [vmem:[#allocation2 + $0x68] sm:$0xff]
        %v986 = vld [vmem:[#allocation2 + $0x70] sm:$0xff]
        %v987 = vld [vmem:[#allocation2 + $0x78] sm:$0xff]
        %v988 = vmax.f32 %v972, %v956
        %v989 = vmax.f32 %v973, %v957
        %v990 = vmax.f32 %v974, %v958
        %v991 = vmax.f32 %v975, %v959
        %v992 = vmax.f32 %v976, %v960
        %v993 = vmax.f32 %v977, %v961
        %v994 = vmax.f32 %v978, %v962
        %v995 = vmax.f32 %v979, %v963
        %v996 = vmax.f32 %v980, %v964
        %v997 = vmax.f32 %v981, %v965
        %v998 = vmax.f32 %v982, %v966
        %v999 = vmax.f32 %v983, %v967
        %v1000 = vmax.f32 %v984, %v968
        %v1001 = vmax.f32 %v985, %v969
        %v1002 = vmax.f32 %v986, %v970
        %v1003 = vmax.f32 %v987, %v971
        %v1004 = vld [vmem:[#allocation3] sm:$0xff]
        %v1005 = vld [vmem:[#allocation3 + $0x8] sm:$0xff]
        %v1006 = vld [vmem:[#allocation3 + $0x10] sm:$0xff]
        %v1007 = vld [vmem:[#allocation3 + $0x18] sm:$0xff]
        %v1008 = vld [vmem:[#allocation3 + $0x20] sm:$0xff]
        %v1009 = vld [vmem:[#allocation3 + $0x28] sm:$0xff]
        %v1010 = vld [vmem:[#allocation3 + $0x30] sm:$0xff]
        %v1011 = vld [vmem:[#allocation3 + $0x38] sm:$0xff]
        %v1012 = vld [vmem:[#allocation3 + $0x40] sm:$0xff]
        %v1013 = vld [vmem:[#allocation3 + $0x48] sm:$0xff]
        %v1014 = vld [vmem:[#allocation3 + $0x50] sm:$0xff]
        %v1015 = vld [vmem:[#allocation3 + $0x58] sm:$0xff]
        %v1016 = vld [vmem:[#allocation3 + $0x60] sm:$0xff]
        %v1017 = vld [vmem:[#allocation3 + $0x68] sm:$0xff]
        %v1018 = vld [vmem:[#allocation3 + $0x70] sm:$0xff]
        %v1019 = vld [vmem:[#allocation3 + $0x78] sm:$0xff]
        %v1020 = vsub.f32 %v972, %v988
        %v1021 = vsub.f32 %v973, %v989
        %v1022 = vsub.f32 %v974, %v990
        %v1023 = vsub.f32 %v975, %v991
        %v1024 = vsub.f32 %v976, %v992
        %v1025 = vsub.f32 %v977, %v993
        %v1026 = vsub.f32 %v978, %v994
        %v1027 = vsub.f32 %v979, %v995
        %v1028 = vsub.f32 %v980, %v996
        %v1029 = vsub.f32 %v981, %v997
        %v1030 = vsub.f32 %v982, %v998
        %v1031 = vsub.f32 %v983, %v999
        %v1032 = vsub.f32 %v984, %v1000
        %v1033 = vsub.f32 %v985, %v1001
        %v1034 = vsub.f32 %v986, %v1002
        %v1035 = vsub.f32 %v987, %v1003
        %v1036 = vmul.f32 %v1020, 1.442695
        %v1037 = vpow.pop %v1036
        %v1038 = vmul.f32 %v1021, 1.442695
        %v1039 = vpow.pop %v1038
        %v1040 = vmul.f32 %v1022, 1.442695
        %v1041 = vpow.pop %v1040
        %v1042 = vmul.f32 %v1023, 1.442695
        %v1043 = vpow.pop %v1042
        %v1044 = vmul.f32 %v1024, 1.442695
        %v1045 = vpow.pop %v1044
        %v1046 = vmul.f32 %v1025, 1.442695
        %v1047 = vpow.pop %v1046
        %v1048 = vmul.f32 %v1026, 1.442695
        %v1049 = vpow.pop %v1048
        %v1050 = vmul.f32 %v1027, 1.442695
        %v1051 = vpow.pop %v1050
        %v1052 = vmul.f32 %v1028, 1.442695
        %v1053 = vpow.pop %v1052
        %v1054 = vmul.f32 %v1029, 1.442695
        %v1055 = vpow.pop %v1054
        %v1056 = vmul.f32 %v1030, 1.442695
        %v1057 = vpow.pop %v1056
        %v1058 = vmul.f32 %v1031, 1.442695
        %v1059 = vpow.pop %v1058
        %v1060 = vmul.f32 %v1032, 1.442695
        %v1061 = vpow.pop %v1060
        %v1062 = vmul.f32 %v1033, 1.442695
        %v1063 = vpow.pop %v1062
        %v1064 = vmul.f32 %v1034, 1.442695
        %v1065 = vpow.pop %v1064
        %v1066 = vmul.f32 %v1035, 1.442695
        %v1067 = vpow.pop %v1066
        %v1068 = vmul.f32 %v1004, %v1037
        %v1069 = vmul.f32 %v1005, %v1039
        %v1070 = vmul.f32 %v1006, %v1041
        %v1071 = vmul.f32 %v1007, %v1043
        %v1072 = vmul.f32 %v1008, %v1045
        %v1073 = vmul.f32 %v1009, %v1047
        %v1074 = vmul.f32 %v1010, %v1049
        %v1075 = vmul.f32 %v1011, %v1051
        %v1076 = vmul.f32 %v1012, %v1053
        %v1077 = vmul.f32 %v1013, %v1055
        %v1078 = vmul.f32 %v1014, %v1057
        %v1079 = vmul.f32 %v1015, %v1059
        %v1080 = vmul.f32 %v1016, %v1061
        %v1081 = vmul.f32 %v1017, %v1063
        %v1082 = vmul.f32 %v1018, %v1065
        %v1083 = vmul.f32 %v1019, %v1067
        %v1084 = vsub.f32 %v956, %v988
        %v1085 = vsub.f32 %v957, %v989
        %v1086 = vsub.f32 %v958, %v990
        %v1087 = vsub.f32 %v959, %v991
        %v1088 = vsub.f32 %v960, %v992
        %v1089 = vsub.f32 %v961, %v993
        %v1090 = vsub.f32 %v962, %v994
        %v1091 = vsub.f32 %v963, %v995
        %v1092 = vsub.f32 %v964, %v996
        %v1093 = vsub.f32 %v965, %v997
        %v1094 = vsub.f32 %v966, %v998
        %v1095 = vsub.f32 %v967, %v999
        %v1096 = vsub.f32 %v968, %v1000
        %v1097 = vsub.f32 %v969, %v1001
        %v1098 = vsub.f32 %v970, %v1002
        %v1099 = vsub.f32 %v971, %v1003
        %v1100 = vmul.f32 %v1084, 1.442695
        %v1101 = vpow.pop %v1100
        %v1102 = vmul.f32 %v1085, 1.442695
        %v1103 = vpow.pop %v1102
        %v1104 = vmul.f32 %v1086, 1.442695
        %v1105 = vpow.pop %v1104
        %v1106 = vmul.f32 %v1087, 1.442695
        %v1107 = vpow.pop %v1106
        %v1108 = vmul.f32 %v1088, 1.442695
        %v1109 = vpow.pop %v1108
        %v1110 = vmul.f32 %v1089, 1.442695
        %v1111 = vpow.pop %v1110
        %v1112 = vmul.f32 %v1090, 1.442695
        %v1113 = vpow.pop %v1112
        %v1114 = vmul.f32 %v1091, 1.442695
        %v1115 = vpow.pop %v1114
        %v1116 = vmul.f32 %v1092, 1.442695
        %v1117 = vpow.pop %v1116
        %v1118 = vmul.f32 %v1093, 1.442695
        %v1119 = vpow.pop %v1118
        %v1120 = vmul.f32 %v1094, 1.442695
        %v1121 = vpow.pop %v1120
        %v1122 = vmul.f32 %v1095, 1.442695
        %v1123 = vpow.pop %v1122
        %v1124 = vmul.f32 %v1096, 1.442695
        %v1125 = vpow.pop %v1124
        %v1126 = vmul.f32 %v1097, 1.442695
        %v1127 = vpow.pop %v1126
        %v1128 = vmul.f32 %v1098, 1.442695
        %v1129 = vpow.pop %v1128
        %v1130 = vmul.f32 %v1099, 1.442695
        %v1131 = vpow.pop %v1130
        %v1132 = vadd.f32 %v1068, %v1101
        %v1133 = vadd.f32 %v1069, %v1103
        %v1134 = vadd.f32 %v1070, %v1105
        %v1135 = vadd.f32 %v1071, %v1107
        %v1136 = vadd.f32 %v1072, %v1109
        %v1137 = vadd.f32 %v1073, %v1111
        %v1138 = vadd.f32 %v1074, %v1113
        %v1139 = vadd.f32 %v1075, %v1115
        %v1140 = vadd.f32 %v1076, %v1117
        %v1141 = vadd.f32 %v1077, %v1119
        %v1142 = vadd.f32 %v1078, %v1121
        %v1143 = vadd.f32 %v1079, %v1123
        %v1144 = vadd.f32 %v1080, %v1125
        %v1145 = vadd.f32 %v1081, %v1127
        %v1146 = vadd.f32 %v1082, %v1129
        %v1147 = vadd.f32 %v1083, %v1131
        %1148 = vst [vmem:[#allocation3] sm:$0xff] %v1132
        %1149 = vst [vmem:[#allocation3 + $0x8] sm:$0xff] %v1133
        %1150 = vst [vmem:[#allocation3 + $0x10] sm:$0xff] %v1134
        %1151 = vst [vmem:[#allocation3 + $0x18] sm:$0xff] %v1135
        %1152 = vst [vmem:[#allocation3 + $0x20] sm:$0xff] %v1136
        %1153 = vst [vmem:[#allocation3 + $0x28] sm:$0xff] %v1137
        %1154 = vst [vmem:[#allocation3 + $0x30] sm:$0xff] %v1138
        %1155 = vst [vmem:[#allocation3 + $0x38] sm:$0xff] %v1139
        %1156 = vst [vmem:[#allocation3 + $0x40] sm:$0xff] %v1140
        %1157 = vst [vmem:[#allocation3 + $0x48] sm:$0xff] %v1141
        %1158 = vst [vmem:[#allocation3 + $0x50] sm:$0xff] %v1142
        %1159 = vst [vmem:[#allocation3 + $0x58] sm:$0xff] %v1143
        %1160 = vst [vmem:[#allocation3 + $0x60] sm:$0xff] %v1144
        %1161 = vst [vmem:[#allocation3 + $0x68] sm:$0xff] %v1145
        %1162 = vst [vmem:[#allocation3 + $0x70] sm:$0xff] %v1146
        %1163 = vst [vmem:[#allocation3 + $0x78] sm:$0xff] %v1147
        %1164 = vst [vmem:[#allocation2] sm:$0xff] %v988
        %1165 = vst [vmem:[#allocation2 + $0x8] sm:$0xff] %v989
        %1166 = vst [vmem:[#allocation2 + $0x10] sm:$0xff] %v990
        %1167 = vst [vmem:[#allocation2 + $0x18] sm:$0xff] %v991
        %1168 = vst [vmem:[#allocation2 + $0x20] sm:$0xff] %v992
        %1169 = vst [vmem:[#allocation2 + $0x28] sm:$0xff] %v993
        %1170 = vst [vmem:[#allocation2 + $0x30] sm:$0xff] %v994
        %1171 = vst [vmem:[#allocation2 + $0x38] sm:$0xff] %v995
        %1172 = vst [vmem:[#allocation2 + $0x40] sm:$0xff] %v996
        %1173 = vst [vmem:[#allocation2 + $0x48] sm:$0xff] %v997
        %1174 = vst [vmem:[#allocation2 + $0x50] sm:$0xff] %v998
        %1175 = vst [vmem:[#allocation2 + $0x58] sm:$0xff] %v999
        %1176 = vst [vmem:[#allocation2 + $0x60] sm:$0xff] %v1000
        %1177 = vst [vmem:[#allocation2 + $0x68] sm:$0xff] %v1001
        %1178 = vst [vmem:[#allocation2 + $0x70] sm:$0xff] %v1002
        %1179 = vst [vmem:[#allocation2 + $0x78] sm:$0xff] %v1003
        %p1180 = scmp.eq.s32.totalorder %s27, 2
        // Predicated region
        $region57: #{tpu_custom_call.1} parent=47 // pred_check
          %p1181 = pneg %p1180
        $region58: #{tpu_custom_call.1} parent=47 // pred_check_branch
          %1183 = sbr.rel (%p1181) target = $region60
        $region59: #{tpu_custom_call.1} parent=47 // pred_region
          %v1184 = vld [vmem:[#allocation2] sm:$0xff]
          %v1185 = vld [vmem:[#allocation2 + $0x8] sm:$0xff]
          %v1186 = vld [vmem:[#allocation2 + $0x10] sm:$0xff]
          %v1187 = vld [vmem:[#allocation2 + $0x18] sm:$0xff]
          %v1188 = vld [vmem:[#allocation2 + $0x20] sm:$0xff]
          %v1189 = vld [vmem:[#allocation2 + $0x28] sm:$0xff]
          %v1190 = vld [vmem:[#allocation2 + $0x30] sm:$0xff]
          %v1191 = vld [vmem:[#allocation2 + $0x38] sm:$0xff]
          %v1192 = vld [vmem:[#allocation2 + $0x40] sm:$0xff]
          %v1193 = vld [vmem:[#allocation2 + $0x48] sm:$0xff]
          %v1194 = vld [vmem:[#allocation2 + $0x50] sm:$0xff]
          %v1195 = vld [vmem:[#allocation2 + $0x58] sm:$0xff]
          %v1196 = vld [vmem:[#allocation2 + $0x60] sm:$0xff]
          %v1197 = vld [vmem:[#allocation2 + $0x68] sm:$0xff]
          %v1198 = vld [vmem:[#allocation2 + $0x70] sm:$0xff]
          %v1199 = vld [vmem:[#allocation2 + $0x78] sm:$0xff]
          %v1200 = vld [vmem:[#allocation3] sm:$0xff]
          %v1201 = vld [vmem:[#allocation3 + $0x8] sm:$0xff]
          %v1202 = vld [vmem:[#allocation3 + $0x10] sm:$0xff]
          %v1203 = vld [vmem:[#allocation3 + $0x18] sm:$0xff]
          %v1204 = vld [vmem:[#allocation3 + $0x20] sm:$0xff]
          %v1205 = vld [vmem:[#allocation3 + $0x28] sm:$0xff]
          %v1206 = vld [vmem:[#allocation3 + $0x30] sm:$0xff]
          %v1207 = vld [vmem:[#allocation3 + $0x38] sm:$0xff]
          %v1208 = vld [vmem:[#allocation3 + $0x40] sm:$0xff]
          %v1209 = vld [vmem:[#allocation3 + $0x48] sm:$0xff]
          %v1210 = vld [vmem:[#allocation3 + $0x50] sm:$0xff]
          %v1211 = vld [vmem:[#allocation3 + $0x58] sm:$0xff]
          %v1212 = vld [vmem:[#allocation3 + $0x60] sm:$0xff]
          %v1213 = vld [vmem:[#allocation3 + $0x68] sm:$0xff]
          %v1214 = vld [vmem:[#allocation3 + $0x70] sm:$0xff]
          %v1215 = vld [vmem:[#allocation3 + $0x78] sm:$0xff]
          %v1216 = vlog2.pop %v1200
          %v1217 = vmul.f32 %v1216, 0.6931472
          %v1218 = vlog2.pop %v1201
          %v1219 = vmul.f32 %v1218, 0.6931472
          %v1220 = vlog2.pop %v1202
          %v1221 = vmul.f32 %v1220, 0.6931472
          %v1222 = vlog2.pop %v1203
          %v1223 = vmul.f32 %v1222, 0.6931472
          %v1224 = vlog2.pop %v1204
          %v1225 = vmul.f32 %v1224, 0.6931472
          %v1226 = vlog2.pop %v1205
          %v1227 = vmul.f32 %v1226, 0.6931472
          %v1228 = vlog2.pop %v1206
          %v1229 = vmul.f32 %v1228, 0.6931472
          %v1230 = vlog2.pop %v1207
          %v1231 = vmul.f32 %v1230, 0.6931472
          %v1232 = vlog2.pop %v1208
          %v1233 = vmul.f32 %v1232, 0.6931472
          %v1234 = vlog2.pop %v1209
          %v1235 = vmul.f32 %v1234, 0.6931472
          %v1236 = vlog2.pop %v1210
          %v1237 = vmul.f32 %v1236, 0.6931472
          %v1238 = vlog2.pop %v1211
          %v1239 = vmul.f32 %v1238, 0.6931472
          %v1240 = vlog2.pop %v1212
          %v1241 = vmul.f32 %v1240, 0.6931472
          %v1242 = vlog2.pop %v1213
          %v1243 = vmul.f32 %v1242, 0.6931472
          %v1244 = vlog2.pop %v1214
          %v1245 = vmul.f32 %v1244, 0.6931472
          %v1246 = vlog2.pop %v1215
          %v1247 = vmul.f32 %v1246, 0.6931472
          %v1248 = vadd.f32 %v1184, %v1217
          %v1249 = vadd.f32 %v1185, %v1219
          %v1250 = vadd.f32 %v1186, %v1221
          %v1251 = vadd.f32 %v1187, %v1223
          %v1252 = vadd.f32 %v1188, %v1225
          %v1253 = vadd.f32 %v1189, %v1227
          %v1254 = vadd.f32 %v1190, %v1229
          %v1255 = vadd.f32 %v1191, %v1231
          %v1256 = vadd.f32 %v1192, %v1233
          %v1257 = vadd.f32 %v1193, %v1235
          %v1258 = vadd.f32 %v1194, %v1237
          %v1259 = vadd.f32 %v1195, %v1239
          %v1260 = vadd.f32 %v1196, %v1241
          %v1261 = vadd.f32 %v1197, %v1243
          %v1262 = vadd.f32 %v1198, %v1245
          %v1263 = vadd.f32 %v1199, %v1247
          %1264 = vadd.xlane.f32.xlu0 %v1248
          %v1265 = vpop.xlane.xlu0 %1264
          %1266 = vadd.xlane.f32.xlu0 %v1249
          %v1267 = vpop.xlane.xlu0 %1266
          %1268 = vadd.xlane.f32.xlu0 %v1250
          %v1269 = vpop.xlane.xlu0 %1268
          %1270 = vadd.xlane.f32.xlu0 %v1251
          %v1271 = vpop.xlane.xlu0 %1270
          %1272 = vadd.xlane.f32.xlu0 %v1252
          %v1273 = vpop.xlane.xlu0 %1272
          %1274 = vadd.xlane.f32.xlu0 %v1253
          %v1275 = vpop.xlane.xlu0 %1274
          %1276 = vadd.xlane.f32.xlu0 %v1254
          %v1277 = vpop.xlane.xlu0 %1276
          %1278 = vadd.xlane.f32.xlu0 %v1255
          %v1279 = vpop.xlane.xlu0 %1278
          %1280 = vadd.xlane.f32.xlu0 %v1256
          %v1281 = vpop.xlane.xlu0 %1280
          %1282 = vadd.xlane.f32.xlu0 %v1257
          %v1283 = vpop.xlane.xlu0 %1282
          %1284 = vadd.xlane.f32.xlu0 %v1258
          %v1285 = vpop.xlane.xlu0 %1284
          %1286 = vadd.xlane.f32.xlu0 %v1259
          %v1287 = vpop.xlane.xlu0 %1286
          %1288 = vadd.xlane.f32.xlu0 %v1260
          %v1289 = vpop.xlane.xlu0 %1288
          %1290 = vadd.xlane.f32.xlu0 %v1261
          %v1291 = vpop.xlane.xlu0 %1290
          %1292 = vadd.xlane.f32.xlu0 %v1262
          %v1293 = vpop.xlane.xlu0 %1292
          %1294 = vadd.xlane.f32.xlu0 %v1263
          %v1295 = vpop.xlane.xlu0 %1294
          %v1296 = vrcp.pop 128.0
          %v1297 = vmul.f32 128.0, %v1296
          %v1298 = vsub.f32 1.0, %v1297
          %v1299 = vmul.f32 %v1296, %v1298
          %v1300 = vadd.f32 %v1296, %v1299
          %vm1301 = vweird.f32 %v1296
          %v1302 = vsel %vm1301, %v1296, %v1300
          %v1303 = vmul.f32 %v1265, %v1302
          %v1304 = vmul.f32 %v1267, %v1302
          %v1305 = vmul.f32 %v1269, %v1302
          %v1306 = vmul.f32 %v1271, %v1302
          %v1307 = vmul.f32 %v1273, %v1302
          %v1308 = vmul.f32 %v1275, %v1302
          %v1309 = vmul.f32 %v1277, %v1302
          %v1310 = vmul.f32 %v1279, %v1302
          %v1311 = vmul.f32 %v1281, %v1302
          %v1312 = vmul.f32 %v1283, %v1302
          %v1313 = vmul.f32 %v1285, %v1302
          %v1314 = vmul.f32 %v1287, %v1302
          %v1315 = vmul.f32 %v1289, %v1302
          %v1316 = vmul.f32 %v1291, %v1302
          %v1317 = vmul.f32 %v1293, %v1302
          %v1318 = vmul.f32 %v1295, %v1302
          %v1319 = vsub.f32 %v1248, %v1303
          %v1320 = vsub.f32 %v1249, %v1304
          %v1321 = vsub.f32 %v1250, %v1305
          %v1322 = vsub.f32 %v1251, %v1306
          %v1323 = vsub.f32 %v1252, %v1307
          %v1324 = vsub.f32 %v1253, %v1308
          %v1325 = vsub.f32 %v1254, %v1309
          %v1326 = vsub.f32 %v1255, %v1310
          %v1327 = vsub.f32 %v1256, %v1311
          %v1328 = vsub.f32 %v1257, %v1312
          %v1329 = vsub.f32 %v1258, %v1313
          %v1330 = vsub.f32 %v1259, %v1314
          %v1331 = vsub.f32 %v1260, %v1315
          %v1332 = vsub.f32 %v1261, %v1316
          %v1333 = vsub.f32 %v1262, %v1317
          %v1334 = vsub.f32 %v1263, %v1318
          %v1335 = vmul.f32 %v1319, %v1319
          %v1336 = vmul.f32 %v1320, %v1320
          %v1337 = vmul.f32 %v1321, %v1321
          %v1338 = vmul.f32 %v1322, %v1322
          %v1339 = vmul.f32 %v1323, %v1323
          %v1340 = vmul.f32 %v1324, %v1324
          %v1341 = vmul.f32 %v1325, %v1325
          %v1342 = vmul.f32 %v1326, %v1326
          %v1343 = vmul.f32 %v1327, %v1327
          %v1344 = vmul.f32 %v1328, %v1328
          %v1345 = vmul.f32 %v1329, %v1329
          %v1346 = vmul.f32 %v1330, %v1330
          %v1347 = vmul.f32 %v1331, %v1331
          %v1348 = vmul.f32 %v1332, %v1332
          %v1349 = vmul.f32 %v1333, %v1333
          %v1350 = vmul.f32 %v1334, %v1334
          %1351 = vadd.xlane.f32.xlu0 %v1335
          %v1352 = vpop.xlane.xlu0 %1351
          %1353 = vadd.xlane.f32.xlu0 %v1336
          %v1354 = vpop.xlane.xlu0 %1353
          %1355 = vadd.xlane.f32.xlu0 %v1337
          %v1356 = vpop.xlane.xlu0 %1355
          %1357 = vadd.xlane.f32.xlu0 %v1338
          %v1358 = vpop.xlane.xlu0 %1357
          %1359 = vadd.xlane.f32.xlu0 %v1339
          %v1360 = vpop.xlane.xlu0 %1359
          %1361 = vadd.xlane.f32.xlu0 %v1340
          %v1362 = vpop.xlane.xlu0 %1361
          %1363 = vadd.xlane.f32.xlu0 %v1341
          %v1364 = vpop.xlane.xlu0 %1363
          %1365 = vadd.xlane.f32.xlu0 %v1342
          %v1366 = vpop.xlane.xlu0 %1365
          %1367 = vadd.xlane.f32.xlu0 %v1343
          %v1368 = vpop.xlane.xlu0 %1367
          %1369 = vadd.xlane.f32.xlu0 %v1344
          %v1370 = vpop.xlane.xlu0 %1369
          %1371 = vadd.xlane.f32.xlu0 %v1345
          %v1372 = vpop.xlane.xlu0 %1371
          %1373 = vadd.xlane.f32.xlu0 %v1346
          %v1374 = vpop.xlane.xlu0 %1373
          %1375 = vadd.xlane.f32.xlu0 %v1347
          %v1376 = vpop.xlane.xlu0 %1375
          %1377 = vadd.xlane.f32.xlu0 %v1348
          %v1378 = vpop.xlane.xlu0 %1377
          %1379 = vadd.xlane.f32.xlu0 %v1349
          %v1380 = vpop.xlane.xlu0 %1379
          %1381 = vadd.xlane.f32.xlu0 %v1350
          %v1382 = vpop.xlane.xlu0 %1381
          %v1383 = vmul.f32 %v1352, %v1302
          %v1384 = vmul.f32 %v1354, %v1302
          %v1385 = vmul.f32 %v1356, %v1302
          %v1386 = vmul.f32 %v1358, %v1302
          %v1387 = vmul.f32 %v1360, %v1302
          %v1388 = vmul.f32 %v1362, %v1302
          %v1389 = vmul.f32 %v1364, %v1302
          %v1390 = vmul.f32 %v1366, %v1302
          %v1391 = vmul.f32 %v1368, %v1302
          %v1392 = vmul.f32 %v1370, %v1302
          %v1393 = vmul.f32 %v1372, %v1302
          %v1394 = vmul.f32 %v1374, %v1302
          %v1395 = vmul.f32 %v1376, %v1302
          %v1396 = vmul.f32 %v1378, %v1302
          %v1397 = vmul.f32 %v1380, %v1302
          %v1398 = vmul.f32 %v1382, %v1302
          %v1399 = vadd.f32 %v1383, 1e-06
          %v1400 = vadd.f32 %v1384, 1e-06
          %v1401 = vadd.f32 %v1385, 1e-06
          %v1402 = vadd.f32 %v1386, 1e-06
          %v1403 = vadd.f32 %v1387, 1e-06
          %v1404 = vadd.f32 %v1388, 1e-06
          %v1405 = vadd.f32 %v1389, 1e-06
          %v1406 = vadd.f32 %v1390, 1e-06
          %v1407 = vadd.f32 %v1391, 1e-06
          %v1408 = vadd.f32 %v1392, 1e-06
          %v1409 = vadd.f32 %v1393, 1e-06
          %v1410 = vadd.f32 %v1394, 1e-06
          %v1411 = vadd.f32 %v1395, 1e-06
          %v1412 = vadd.f32 %v1396, 1e-06
          %v1413 = vadd.f32 %v1397, 1e-06
          %v1414 = vadd.f32 %v1398, 1e-06
          %v1415 = vrsqrt.pop %v1399
          %v1416 = vmul.f32 %v1415, %v1399
          %v1417 = vmul.f32 %v1416, %v1415
          %v1418 = vmul.f32 0.5, %v1417
          %v1419 = vsub.f32 1.5, %v1418
          %v1420 = vmul.f32 %v1415, %v1419
          %vm1421 = vweird.f32 %v1399
          %vm1422 = vweird.f32 %v1415
          %vm1423 = vmor %vm1421, %vm1422
          %v1424 = vsel %vm1423, %v1415, %v1420
          %v1425 = vrsqrt.pop %v1400
          %v1426 = vmul.f32 %v1425, %v1400
          %v1427 = vmul.f32 %v1426, %v1425
          %v1428 = vmul.f32 0.5, %v1427
          %v1429 = vsub.f32 1.5, %v1428
          %v1430 = vmul.f32 %v1425, %v1429
          %vm1431 = vweird.f32 %v1400
          %vm1432 = vweird.f32 %v1425
          %vm1433 = vmor %vm1431, %vm1432
          %v1434 = vsel %vm1433, %v1425, %v1430
          %v1435 = vrsqrt.pop %v1401
          %v1436 = vmul.f32 %v1435, %v1401
          %v1437 = vmul.f32 %v1436, %v1435
          %v1438 = vmul.f32 0.5, %v1437
          %v1439 = vsub.f32 1.5, %v1438
          %v1440 = vmul.f32 %v1435, %v1439
          %vm1441 = vweird.f32 %v1401
          %vm1442 = vweird.f32 %v1435
          %vm1443 = vmor %vm1441, %vm1442
          %v1444 = vsel %vm1443, %v1435, %v1440
          %v1445 = vrsqrt.pop %v1402
          %v1446 = vmul.f32 %v1445, %v1402
          %v1447 = vmul.f32 %v1446, %v1445
          %v1448 = vmul.f32 0.5, %v1447
          %v1449 = vsub.f32 1.5, %v1448
          %v1450 = vmul.f32 %v1445, %v1449
          %vm1451 = vweird.f32 %v1402
          %vm1452 = vweird.f32 %v1445
          %vm1453 = vmor %vm1451, %vm1452
          %v1454 = vsel %vm1453, %v1445, %v1450
          %v1455 = vrsqrt.pop %v1403
          %v1456 = vmul.f32 %v1455, %v1403
          %v1457 = vmul.f32 %v1456, %v1455
          %v1458 = vmul.f32 0.5, %v1457
          %v1459 = vsub.f32 1.5, %v1458
          %v1460 = vmul.f32 %v1455, %v1459
          %vm1461 = vweird.f32 %v1403
          %vm1462 = vweird.f32 %v1455
          %vm1463 = vmor %vm1461, %vm1462
          %v1464 = vsel %vm1463, %v1455, %v1460
          %v1465 = vrsqrt.pop %v1404
          %v1466 = vmul.f32 %v1465, %v1404
          %v1467 = vmul.f32 %v1466, %v1465
          %v1468 = vmul.f32 0.5, %v1467
          %v1469 = vsub.f32 1.5, %v1468
          %v1470 = vmul.f32 %v1465, %v1469
          %vm1471 = vweird.f32 %v1404
          %vm1472 = vweird.f32 %v1465
          %vm1473 = vmor %vm1471, %vm1472
          %v1474 = vsel %vm1473, %v1465, %v1470
          %v1475 = vrsqrt.pop %v1405
          %v1476 = vmul.f32 %v1475, %v1405
          %v1477 = vmul.f32 %v1476, %v1475
          %v1478 = vmul.f32 0.5, %v1477
          %v1479 = vsub.f32 1.5, %v1478
          %v1480 = vmul.f32 %v1475, %v1479
          %vm1481 = vweird.f32 %v1405
          %vm1482 = vweird.f32 %v1475
          %vm1483 = vmor %vm1481, %vm1482
          %v1484 = vsel %vm1483, %v1475, %v1480
          %v1485 = vrsqrt.pop %v1406
          %v1486 = vmul.f32 %v1485, %v1406
          %v1487 = vmul.f32 %v1486, %v1485
          %v1488 = vmul.f32 0.5, %v1487
          %v1489 = vsub.f32 1.5, %v1488
          %v1490 = vmul.f32 %v1485, %v1489
          %vm1491 = vweird.f32 %v1406
          %vm1492 = vweird.f32 %v1485
          %vm1493 = vmor %vm1491, %vm1492
          %v1494 = vsel %vm1493, %v1485, %v1490
          %v1495 = vrsqrt.pop %v1407
          %v1496 = vmul.f32 %v1495, %v1407
          %v1497 = vmul.f32 %v1496, %v1495
          %v1498 = vmul.f32 0.5, %v1497
          %v1499 = vsub.f32 1.5, %v1498
          %v1500 = vmul.f32 %v1495, %v1499
          %vm1501 = vweird.f32 %v1407
          %vm1502 = vweird.f32 %v1495
          %vm1503 = vmor %vm1501, %vm1502
          %v1504 = vsel %vm1503, %v1495, %v1500
          %v1505 = vrsqrt.pop %v1408
          %v1506 = vmul.f32 %v1505, %v1408
          %v1507 = vmul.f32 %v1506, %v1505
          %v1508 = vmul.f32 0.5, %v1507
          %v1509 = vsub.f32 1.5, %v1508
          %v1510 = vmul.f32 %v1505, %v1509
          %vm1511 = vweird.f32 %v1408
          %vm1512 = vweird.f32 %v1505
          %vm1513 = vmor %vm1511, %vm1512
          %v1514 = vsel %vm1513, %v1505, %v1510
          %v1515 = vrsqrt.pop %v1409
          %v1516 = vmul.f32 %v1515, %v1409
          %v1517 = vmul.f32 %v1516, %v1515
          %v1518 = vmul.f32 0.5, %v1517
          %v1519 = vsub.f32 1.5, %v1518
          %v1520 = vmul.f32 %v1515, %v1519
          %vm1521 = vweird.f32 %v1409
          %vm1522 = vweird.f32 %v1515
          %vm1523 = vmor %vm1521, %vm1522
          %v1524 = vsel %vm1523, %v1515, %v1520
          %v1525 = vrsqrt.pop %v1410
          %v1526 = vmul.f32 %v1525, %v1410
          %v1527 = vmul.f32 %v1526, %v1525
          %v1528 = vmul.f32 0.5, %v1527
          %v1529 = vsub.f32 1.5, %v1528
          %v1530 = vmul.f32 %v1525, %v1529
          %vm1531 = vweird.f32 %v1410
          %vm1532 = vweird.f32 %v1525
          %vm1533 = vmor %vm1531, %vm1532
          %v1534 = vsel %vm1533, %v1525, %v1530
          %v1535 = vrsqrt.pop %v1411
          %v1536 = vmul.f32 %v1535, %v1411
          %v1537 = vmul.f32 %v1536, %v1535
          %v1538 = vmul.f32 0.5, %v1537
          %v1539 = vsub.f32 1.5, %v1538
          %v1540 = vmul.f32 %v1535, %v1539
          %vm1541 = vweird.f32 %v1411
          %vm1542 = vweird.f32 %v1535
          %vm1543 = vmor %vm1541, %vm1542
          %v1544 = vsel %vm1543, %v1535, %v1540
          %v1545 = vrsqrt.pop %v1412
          %v1546 = vmul.f32 %v1545, %v1412
          %v1547 = vmul.f32 %v1546, %v1545
          %v1548 = vmul.f32 0.5, %v1547
          %v1549 = vsub.f32 1.5, %v1548
          %v1550 = vmul.f32 %v1545, %v1549
          %vm1551 = vweird.f32 %v1412
          %vm1552 = vweird.f32 %v1545
          %vm1553 = vmor %vm1551, %vm1552
          %v1554 = vsel %vm1553, %v1545, %v1550
          %v1555 = vrsqrt.pop %v1413
          %v1556 = vmul.f32 %v1555, %v1413
          %v1557 = vmul.f32 %v1556, %v1555
          %v1558 = vmul.f32 0.5, %v1557
          %v1559 = vsub.f32 1.5, %v1558
          %v1560 = vmul.f32 %v1555, %v1559
          %vm1561 = vweird.f32 %v1413
          %vm1562 = vweird.f32 %v1555
          %vm1563 = vmor %vm1561, %vm1562
          %v1564 = vsel %vm1563, %v1555, %v1560
          %v1565 = vrsqrt.pop %v1414
          %v1566 = vmul.f32 %v1565, %v1414
          %v1567 = vmul.f32 %v1566, %v1565
          %v1568 = vmul.f32 0.5, %v1567
          %v1569 = vsub.f32 1.5, %v1568
          %v1570 = vmul.f32 %v1565, %v1569
          %vm1571 = vweird.f32 %v1414
          %vm1572 = vweird.f32 %v1565
          %vm1573 = vmor %vm1571, %vm1572
          %v1574 = vsel %vm1573, %v1565, %v1570
          %v1575 = vmul.f32 %v1319, %v1424
          %v1576 = vmul.f32 %v1320, %v1434
          %v1577 = vmul.f32 %v1321, %v1444
          %v1578 = vmul.f32 %v1322, %v1454
          %v1579 = vmul.f32 %v1323, %v1464
          %v1580 = vmul.f32 %v1324, %v1474
          %v1581 = vmul.f32 %v1325, %v1484
          %v1582 = vmul.f32 %v1326, %v1494
          %v1583 = vmul.f32 %v1327, %v1504
          %v1584 = vmul.f32 %v1328, %v1514
          %v1585 = vmul.f32 %v1329, %v1524
          %v1586 = vmul.f32 %v1330, %v1534
          %v1587 = vmul.f32 %v1331, %v1544
          %v1588 = vmul.f32 %v1332, %v1554
          %v1589 = vmul.f32 %v1333, %v1564
          %v1590 = vmul.f32 %v1334, %v1574
          %v1591 = vld [vmem:[%s5] sm:$0x1]
          %v1593 = vperm.slane %v1591, 0
          %v1595 = vmul.f32 %v1575, %v1593
          %v1596 = vmul.f32 %v1576, %v1593
          %v1597 = vmul.f32 %v1577, %v1593
          %v1598 = vmul.f32 %v1578, %v1593
          %v1599 = vmul.f32 %v1579, %v1593
          %v1600 = vmul.f32 %v1580, %v1593
          %v1601 = vmul.f32 %v1581, %v1593
          %v1602 = vmul.f32 %v1582, %v1593
          %v1603 = vmul.f32 %v1583, %v1593
          %v1604 = vmul.f32 %v1584, %v1593
          %v1605 = vmul.f32 %v1585, %v1593
          %v1606 = vmul.f32 %v1586, %v1593
          %v1607 = vmul.f32 %v1587, %v1593
          %v1608 = vmul.f32 %v1588, %v1593
          %v1609 = vmul.f32 %v1589, %v1593
          %v1610 = vmul.f32 %v1590, %v1593
          %v1611 = vld [vmem:[%s6] sm:$0x1]
          %v1613 = vperm.slane %v1611, 0
          %v1615 = vadd.f32 %v1595, %v1613
          %v1616 = vadd.f32 %v1596, %v1613
          %v1617 = vadd.f32 %v1597, %v1613
          %v1618 = vadd.f32 %v1598, %v1613
          %v1619 = vadd.f32 %v1599, %v1613
          %v1620 = vadd.f32 %v1600, %v1613
          %v1621 = vadd.f32 %v1601, %v1613
          %v1622 = vadd.f32 %v1602, %v1613
          %v1623 = vadd.f32 %v1603, %v1613
          %v1624 = vadd.f32 %v1604, %v1613
          %v1625 = vadd.f32 %v1605, %v1613
          %v1626 = vadd.f32 %v1606, %v1613
          %v1627 = vadd.f32 %v1607, %v1613
          %v1628 = vadd.f32 %v1608, %v1613
          %v1629 = vadd.f32 %v1609, %v1613
          %v1630 = vadd.f32 %v1610, %v1613
          %1631 = vst [vmem:[%s339] sm:$0xff] %v1615
          %1632 = vst [vmem:[%s339 + $0x8] sm:$0xff] %v1616
          %1633 = vst [vmem:[%s339 + $0x10] sm:$0xff] %v1617
          %1634 = vst [vmem:[%s339 + $0x18] sm:$0xff] %v1618
          %1635 = vst [vmem:[%s339 + $0x20] sm:$0xff] %v1619
          %1636 = vst [vmem:[%s339 + $0x28] sm:$0xff] %v1620
          %1637 = vst [vmem:[%s339 + $0x30] sm:$0xff] %v1621
          %1638 = vst [vmem:[%s339 + $0x38] sm:$0xff] %v1622
          %1639 = vst [vmem:[%s339 + $0x40] sm:$0xff] %v1623
          %1640 = vst [vmem:[%s339 + $0x48] sm:$0xff] %v1624
          %1641 = vst [vmem:[%s339 + $0x50] sm:$0xff] %v1625
          %1642 = vst [vmem:[%s339 + $0x58] sm:$0xff] %v1626
          %1643 = vst [vmem:[%s339 + $0x60] sm:$0xff] %v1627
          %1644 = vst [vmem:[%s339 + $0x68] sm:$0xff] %v1628
          %1645 = vst [vmem:[%s339 + $0x70] sm:$0xff] %v1629
          %1646 = vst [vmem:[%s339 + $0x78] sm:$0xff] %v1630
        $region60: #{tpu_custom_call.1} parent=47 // pred_fallthru
          _
        %s1647 = sand.u32 %s203, 1
        %s1648 = scalar_lea.sflag [#allocation6], %s1647
        %s1649 = sand.u32 %s203, 1
        %s1650 = smul.addr %s1649, 128
        %s1651 = scalar_lea.vmem [#allocation7], %s1650
        // Predicated region
        $region61: #{tpu_custom_call.1} parent=47 // pred_check
          %p1652 = pneg %p213
        $region62: #{tpu_custom_call.1} parent=47 // pred_check_branch
          %1654 = sbr.rel (%p1652) target = $region64
        $region63: #{tpu_custom_call.1} parent=47 // pred_region
          %s1655 = smul.u32 16, %s26
          %1657 = vsyncadd %s1648, 0
          %s1658 = smul.addr %s1655, 8
          %s1659 = scalar_lea.hbm %s7, %s1658
          %s1660 = sshll.u32 %s1651, 4
          %s1661 = int_to_ptr.vmem [resolvable:$true] %s1660
          %s1662 = sshll.u32 %s1659, 4
          %s1663 = int_to_ptr.hbm [resolvable:$true] %s1662
          %1668 = dma.vmem_to_hbm [thread:$0]  %s1661, 2048, %s1663, %s1648, 128, 128, 8
        $region64: #{tpu_custom_call.1} parent=47 // pred_fallthru
          _
      $region48: #{tpu_custom_call.1} parent=5 // pred_fallthru
        _
      %p1669 = scmp.le.s32.totalorder 2, %s17
      // Predicated region
      $region65: #{tpu_custom_call.1} parent=5 // pred_check
        %p1670 = pneg %p1669
      $region66: #{tpu_custom_call.1} parent=5 // pred_check_branch
        %1672 = sbr.rel (%p1670) target = $region68
      $region67: #{tpu_custom_call.1} parent=5 // pred_region
        %s1673 = ssub.s32 %s17, 2
        // Predicated region
        $region69: #{tpu_custom_call.1} parent=67 // pred_check
          %p1674 = pneg %p219
        $region70: #{tpu_custom_call.1} parent=67 // pred_check_branch
          %1676 = sbr.rel (%p1674) target = $region72
        $region71: #{tpu_custom_call.1} parent=67 // pred_region
          %s1677 = sand.u32 %s204, 1
          %s1678 = scalar_lea.sflag [#allocation6], %s1677
          %s1679 = sand.u32 %s204, 1
          %s1680 = smul.addr %s1679, 128
          %s1681 = scalar_lea.vmem [#allocation7], %s1680
          %1683 = dma.done %s1678, 2048
        $region72: #{tpu_custom_call.1} parent=67 // pred_fallthru
          _
      $region68: #{tpu_custom_call.1} parent=5 // pred_fallthru
        _
    $region6: #{tpu_custom_call.1} parent=1 // loop_footer
      %s21 = sadd.s32 1, %s17
    $region7: #{tpu_custom_call.1} parent=1 // loop_footer_branch
      %16 = sbr.rel target = $region3
    $region8: #{tpu_custom_call.1} parent=1 // loop_exit
      _
    %1684 = vsyncpa [#allocation5], 1
    %s1685 = scalar_lea.sflag [#allocation5], 1
    %1686 = vsyncpa %s1685, 1
    %1687 = vsyncpa [#allocation6], 1
    %s1688 = scalar_lea.sflag [#allocation6], 1
    %1689 = vsyncpa %s1688, 1

</llo_original>
